<compile_context>
chip_gen: v7x
topology: tpu7x:2x2x1
jax: 0.10.0
libtpu: 0.0.40
codegen_flags: <defaults>
</compile_context>

<pallas_src>
import functools

import jax
import jax.numpy as jnp
from jax.experimental import pallas as pl
from jax.experimental.pallas import tpu as pltpu

EPS = 1e-5
SLOPE = 0.2


# --------------------------------------------------------------------------- #
# In-kernel helpers
# --------------------------------------------------------------------------- #
def _leaky_relu(v):
    return jnp.maximum(v, SLOPE * v)


def _store_partial_stats(stats_ref, t):
    # Per-strip, per-channel partial [sum, sum_sq] in f32 (lane reduce only,
    # keepdims -> no scalar extraction).  The cross-strip / cross-channel
    # combine and the rsqrt happen on the host (tiny arrays), which is the
    # "two-pass GroupNorm" the strip tiling requires.
    t32 = t.astype(jnp.float32)
    stats_ref[:, 0:1] = jnp.sum(t32, axis=1, keepdims=True)
    stats_ref[:, 1:2] = jnp.sum(t32 * t32, axis=1, keepdims=True)


def _expand_stats_kernel(x_ref, w1_ref, stats_ref, *, compute_dtype):
    # GN1 pass 1: run the 1x1 expansion conv on this strip and emit partial
    # statistics only.  The conv is recomputed in the depthwise kernel, which
    # is cheaper than a full HBM write+read of the bottleneck activations.
    x = x_ref[...].astype(compute_dtype)          # (Cin, L)
    w = w1_ref[...].astype(compute_dtype)         # (Cb, Cin)
    t = jnp.dot(w, x, preferred_element_type=jnp.float32)
    _store_partial_stats(stats_ref, t)


def _expand_dw_kernel(xe_ref, w1_ref, aff1_ref, dwp_ref, t2_ref, stats_ref,
                      *, W, L, compute_dtype):
    # 1x1 expansion conv -> GN1 affine -> LeakyReLU -> 3x3 depthwise conv.
    # The input strip carries a 1-row halo on each side with the image-level
    # reflection already applied, so vertical taps are plain lane slices and
    # only the column reflection needs a roll + where.
    xe = xe_ref[...].astype(compute_dtype)        # (Cin, L + 2W)
    w1 = w1_ref[...].astype(compute_dtype)        # (Cb, Cin)
    t = jnp.dot(w1, xe, preferred_element_type=jnp.float32)   # (Cb, L + 2W)

    scale = aff1_ref[:, 0:1]                      # (Cb, 1) f32
    shift = aff1_ref[:, 1:2]
    y = _leaky_relu(t * scale + shift).astype(compute_dtype)

    yu = y[:, 0:L]                                # value at (h-1, w)
    yc = y[:, W:W + L]                            # value at (h,   w)
    yd = y[:, 2 * W:2 * W + L]                    # value at (h+1, w)

    col = jax.lax.broadcasted_iota(jnp.int32, (1, L), 1) % W
    is_c0 = col == 0
    is_cW = col == (W - 1)

    # Hoisted, loop-invariant weight columns (9 taps) + bias.
    wk = [dwp_ref[:, k:k + 1].astype(compute_dtype) for k in range(9)]
    bias = dwp_ref[:, 9:10]                       # (Cb, 1) f32

    acc = None
    for dy, v in enumerate((yu, yc, yd)):         # dy = 0,1,2 <-> row -1,0,+1
        v_p1 = pltpu.roll(v, 1, 1)                # value at w-1 (wraps)
        v_m1 = pltpu.roll(v, L - 1, 1)            # value at w+1 (wraps)
        left = jnp.where(is_c0, v_m1, v_p1)       # reflect: w=-1 -> w=1
        right = jnp.where(is_cW, v_p1, v_m1)      # reflect: w=W  -> w=W-2
        part = (left * wk[dy * 3 + 0] + v * wk[dy * 3 + 1]
                + right * wk[dy * 3 + 2])
        acc = part if acc is None else acc + part
    acc = acc.astype(jnp.float32) + bias          # (Cb, L)

    t2_ref[...] = acc.astype(t2_ref.dtype)
    _store_partial_stats(stats_ref, acc)          # GN2 pass 1


def _project_kernel(t2_ref, aff2_ref, w3_ref, t3_ref, stats_ref,
                    *, compute_dtype):
    # GN2 affine -> LeakyReLU -> 1x1 projection conv; emit GN3 partial stats.
    scale = aff2_ref[:, 0:1]
    shift = aff2_ref[:, 1:2]
    z = _leaky_relu(t2_ref[...] * scale + shift).astype(compute_dtype)
    w3 = w3_ref[...].astype(compute_dtype)        # (Cout, Cb)
    t3 = jnp.dot(w3, z, preferred_element_type=jnp.float32)
    t3_ref[...] = t3.astype(t3_ref.dtype)
    _store_partial_stats(stats_ref, t3)


def _finish_kernel(*refs, use_res):
    # GN3 affine (+ residual add).
    if use_res:
        t3_ref, x_ref, aff3_ref, o_ref = refs
    else:
        t3_ref, aff3_ref, o_ref = refs
    scale = aff3_ref[:, 0:1]
    shift = aff3_ref[:, 1:2]
    out = t3_ref[...] * scale + shift
    if use_res:
        out = out + x_ref[...]
    o_ref[...] = out.astype(o_ref.dtype)


# --------------------------------------------------------------------------- #
# Host-side glue
# --------------------------------------------------------------------------- #
def _finish_group_norm_stats(stats, gamma, beta, count):
    # stats: (N, S, C, 2) per-strip per-channel partial [sum, sum_sq].
    # Returns per-sample per-channel (scale, shift) packed as (N, C, 2).
    tot = jnp.sum(stats, axis=(1, 2))                              # (N, 2)
    mean = tot[:, 0] / count
    var = jnp.maximum(tot[:, 1] / count - mean * mean, 0.0)
    inv = jax.lax.rsqrt(var + EPS)                                 # (N,)
    scale = gamma[None, :].astype(jnp.float32) * inv[:, None]      # (N, C)
    shift = beta[None, :].astype(jnp.float32) - mean[:, None] * scale
    return jnp.stack([scale, shift], axis=-1)                      # (N, C, 2)


def _expand_row_strips(x4, tile_rows):
    # (N, C, H, W) -> (N, S, C, (tile_rows + 2) * W): every strip carries a
    # 1-row halo above/below, with the reflect-pad already applied at the
    # image top/bottom (valid because conv1x1/GN/LReLU are pointwise, so
    # reflecting before them equals reflecting after).
    N, C, H, W = x4.shape
    S = H // tile_rows
    xp = jnp.pad(x4, ((0, 0), (0, 0), (1, 1), (0, 0)), mode="reflect")
    rows = jnp.arange(S)[:, None] * tile_rows + jnp.arange(tile_rows + 2)[None, :]
    xe = xp[:, :, rows, :]                                         # (N, C, S, TH+2, W)
    return jnp.transpose(xe, (0, 2, 1, 3, 4)).reshape(N, S, C, (tile_rows + 2) * W)


def _default_vmem_limit_bytes():
    # Generation-aware scoped-VMEM request (scoped default is only 16/32 MiB);
    # leave headroom below physical (128 MiB v5e/v6e, 64 MiB per core on v7x).
    try:
        cap = int(pltpu.get_tpu_info().vmem_capacity_bytes)
    except Exception:
        cap = 64 << 20
    return min(cap * 3 // 4, 96 << 20)


def _choose_tile_rows(H, W, c_max, vmem_limit_bytes):
    # Largest row strip whose estimated per-step footprint (double-buffered
    # in/out strip blocks + ~8 live (C, L) f32 temporaries in the depthwise
    # kernel) fits a fraction of the scoped VMEM limit.  Strips other than the
    # full image must keep the flattened pixel block a multiple of 128 lanes.
    budget = max(int(vmem_limit_bytes * 0.55), 4 << 20)

    def fits(th):
        L = th * W
        return 4 * c_max * (2 * (L + 2 * W) + 10 * L) <= budget

    cands = [H] + [th for th in range(2, H) if H % th == 0 and (th * W) % 128 == 0]
    good = [th for th in cands if fits(th)]
    if good:
        return max(good)
    # Nothing fits the budget: best effort with the smallest legal strip.
    # TODO(synk): pad W up to a lane multiple for very wide images whose row
    # count has no suitable divisor, so narrow strips stay legal.
    proper = [th for th in cands if th != H]
    return min(proper) if proper else H


# --------------------------------------------------------------------------- #
# Public entry point
# --------------------------------------------------------------------------- #
def inverted_res_block(x_nchw, params, *, use_res, tile_rows=None,
                       fast_math=False, vmem_limit_bytes=None):
    """Strip-tiled Pallas forward of InvertedResBlock.

    x_nchw: (N, Cin, H, W) float.  Returns (N, Cout, H, W) float32.
    fast_math=True runs MXU matmuls + depthwise/LReLU VPU chain in bf16
    (recommended on v6e/v7x at large channel counts; keep False on v5e).
    """
    (w1, g1, b1, wdw, bdw, g2, b2, w3, g3, b3) = params
    N, Cin, H, W = x_nchw.shape
    Cb = w1.shape[0]
    Cout = w3.shape[0]
    HW = H * W
    assert H >= 2 and W >= 2, "reflect pad=1 requires H >= 2 and W >= 2"
    if use_res:
        assert Cin == Cout, "residual connection requires in_ch == out_ch"

    if vmem_limit_bytes is None:
        vmem_limit_bytes = _default_vmem_limit_bytes()
    if tile_rows is None:
        tile_rows = _choose_tile_rows(H, W, max(Cin, Cb, Cout), vmem_limit_bytes)
    TH = tile_rows
    assert H % TH == 0 and TH >= 2, "tile_rows must divide H and be >= 2"
    assert TH == H or (TH * W) % 128 == 0, \
        "strip pixel count must be a multiple of 128 lanes (or the full image)"
    S = H // TH
    L = TH * W
    Lexp = L + 2 * W

    compute_dtype = jnp.bfloat16 if fast_math else jnp.float32

    # Inputs / packed parameters (weight casts hoisted out of the kernels).
    x_flat = x_nchw.reshape(N, Cin, HW).astype(jnp.float32)
    x_exp = _expand_row_strips(x_nchw.astype(jnp.float32), TH)
    w1f = w1.astype(compute_dtype)
    w3f = w3.astype(compute_dtype)
    dwp = jnp.concatenate([wdw.reshape(Cb, 9), bdw.reshape(Cb, 1)],
                          axis=1).astype(jnp.float32)            # (Cb, 10)

    grid = (N, S)                                # both axes megacore-shardable
    cparams = pltpu.CompilerParams(
        dimension_semantics=("parallel", "parallel"),
        vmem_limit_bytes=int(vmem_limit_bytes))

    strip_spec = lambda C: pl.BlockSpec((None, C, L), lambda n, s: (n, 0, s))
    full_spec = lambda r, c: pl.BlockSpec((r, c), lambda n, s: (0, 0))
    aff_spec = lambda C: pl.BlockSpec((None, C, 2), lambda n, s: (n, 0, 0))
    stats_spec = lambda C: pl.BlockSpec((None, None, C, 2), lambda n, s: (n, s, 0, 0))
    stats_shape = lambda C: jax.ShapeDtypeStruct((N, S, C, 2), jnp.float32)
    xe_spec = pl.BlockSpec((None, None, Cin, Lexp), lambda n, s: (n, s, 0, 0))

    # ---- GN1 pass 1: expansion-conv statistics over each strip. ------------
    stats1 = pl.pallas_call(
        functools.partial(_expand_stats_kernel, compute_dtype=compute_dtype),
        out_shape=stats_shape(Cb),
        grid=grid,
        in_specs=[strip_spec(Cin), full_spec(Cb, Cin)],
        out_specs=stats_spec(Cb),
        compiler_params=cparams,
    )(x_flat, w1f)
    aff1 = _finish_group_norm_stats(stats1, g1, b1, Cb * HW)

    # ---- expansion conv (recomputed) -> GN1 -> LReLU -> depthwise 3x3. -----
    t2, stats2 = pl.pallas_call(
        functools.partial(_expand_dw_kernel, W=W, L=L, compute_dtype=compute_dtype),
        out_shape=(jax.ShapeDtypeStruct((N, Cb, HW), jnp.float32), stats_shape(Cb)),
        grid=grid,
        in_specs=[xe_spec, full_spec(Cb, Cin), aff_spec(Cb), full_spec(Cb, 10)],
        out_specs=(strip_spec(Cb), stats_spec(Cb)),
        compiler_params=cparams,
    )(x_exp, w1f, aff1, dwp)
    aff2 = _finish_group_norm_stats(stats2, g2, b2, Cb * HW)

    # ---- GN2 -> LReLU -> 1x1 projection conv. -------------------------------
    t3, stats3 = pl.pallas_call(
        functools.partial(_project_kernel, compute_dtype=compute_dtype),
        out_shape=(jax.ShapeDtypeStruct((N, Cout, HW), jnp.float32), stats_shape(Cout)),
        grid=grid,
        in_specs=[strip_spec(Cb), aff_spec(Cb), full_spec(Cout, Cb)],
        out_specs=(strip_spec(Cout), stats_spec(Cout)),
        compiler_params=cparams,
    )(t2, aff2, w3f)
    aff3 = _finish_group_norm_stats(stats3, g3, b3, Cout * HW)

    # ---- GN3 affine -> residual add. ----------------------------------------
    operands = [t3] + ([x_flat] if use_res else []) + [aff3]
    in_specs = [strip_spec(Cout)] + ([strip_spec(Cin)] if use_res else []) + [aff_spec(Cout)]
    out_flat = pl.pallas_call(
        functools.partial(_finish_kernel, use_res=use_res),
        out_shape=jax.ShapeDtypeStruct((N, Cout, HW), jnp.float32),
        grid=grid,
        in_specs=in_specs,
        out_specs=strip_spec(Cout),
        compiler_params=cparams,
    )(*operands)

    # TODO(synk): optionally emit bf16 output on v5e to halve store traffic.
    return out_flat.reshape(N, Cout, H, W)


# --------------------------------------------------------------------------- #
# Pure-JAX reference (validation) and synthetic parameters
# --------------------------------------------------------------------------- #
def reference_forward(x, params, *, use_res):
    (w1, g1, b1, wdw, bdw, g2, b2, w3, g3, b3) = params
    N, Cin, H, W = x.shape

    def gn(y, gamma, beta):
        mean = jnp.mean(y, axis=(1, 2, 3), keepdims=True)
        var = jnp.mean((y - mean) ** 2, axis=(1, 2, 3), keepdims=True)
        return ((y - mean) * jax.lax.rsqrt(var + EPS)
                * gamma.reshape(1, -1, 1, 1) + beta.reshape(1, -1, 1, 1))

    lrelu = lambda y: jnp.where(y > 0, y, SLOPE * y)

    y = jnp.einsum('oc,nchw->nohw', w1, x)
    y = lrelu(gn(y, g1, b1))
    yp = jnp.pad(y, ((0, 0), (0, 0), (1, 1), (1, 1)), mode='reflect')
    acc = sum(yp[:, :, dy:dy + H, dx:dx + W] * wdw[:, dy, dx].reshape(1, -1, 1, 1)
              for dy in range(3) for dx in range(3))
    acc = acc + bdw.reshape(1, -1, 1, 1)
    z = lrelu(gn(acc, g2, b2))
    out = jnp.einsum('oc,nchw->nohw', w3, z)
    out = gn(out, g3, b3)
    if use_res:
        out = out + x
    return out


def make_params(key, in_ch, out_ch, expansion_ratio=2):
    bottleneck = int(round(in_ch * expansion_ratio))
    ks = jax.random.split(key, 10)
    nrm = lambda k, shape, s: s * jax.random.normal(k, shape, jnp.float32)
    w1 = nrm(ks[0], (bottleneck, in_ch), 0.2)          # 1x1 expansion conv
    g1 = 1.0 + nrm(ks[1], (bottleneck,), 0.1)
    b1 = nrm(ks[2], (bottleneck,), 0.1)
    wdw = nrm(ks[3], (bottleneck, 3, 3), 0.2)          # depthwise 3x3
    bdw = nrm(ks[4], (bottleneck,), 0.1)
    g2 = 1.0 + nrm(ks[5], (bottleneck,), 0.1)
    b2 = nrm(ks[6], (bottleneck,), 0.1)
    w3 = nrm(ks[7], (out_ch, bottleneck), 0.2)         # 1x1 projection conv
    g3 = 1.0 + nrm(ks[8], (out_ch,), 0.1)
    b3 = nrm(ks[9], (out_ch,), 0.1)
    return (w1, g1, b1, wdw, bdw, g2, b2, w3, g3, b3)


if __name__ == "__main__":
    N, C, H, W = 2, 4, 16, 16                 # in_ch == out_ch -> residual used
    key = jax.random.PRNGKey(0)
    kx, kp = jax.random.split(key)
    x = jax.random.normal(kx, (N, C, H, W), jnp.float32)   # NCHW, like PyTorch
    params = make_params(kp, C, C, expansion_ratio=2)
    use_res = True

    # Auto-chosen strip size (whole image at this size) and a forced 2-strip
    # run that exercises the halo / multi-strip GroupNorm path.
    fwd_auto = jax.jit(lambda xv, pv: inverted_res_block(xv, pv, use_res=use_res))
    fwd_strips = jax.jit(lambda xv, pv: inverted_res_block(xv, pv, use_res=use_res,
                                                           tile_rows=8))

    out_auto = jax.block_until_ready(fwd_auto(x, params))
    out_strips = jax.block_until_ready(fwd_strips(x, params))

    ref = reference_forward(x, params, use_res=use_res)
    assert out_auto.shape == (N, C, H, W)
    assert jnp.allclose(out_auto, ref, atol=1e-4, rtol=1e-4), "mismatch (auto tiling)"
    assert jnp.allclose(out_strips, ref, atol=1e-4, rtol=1e-4), "mismatch (strip tiling)"

    print("KERNEL_OK")
</pallas_src>

<mosaic_0001>
module attributes {stable_mosaic.version = 11 : i64} {
  func.func @_expand_stats_kernel(%arg0: i32, %arg1: i32, %arg2: memref<1x4x256xf32, #tpu.memory_space<vmem>>, %arg3: memref<8x4xf32, #tpu.memory_space<vmem>>, %arg4: memref<1x1x8x2xf32, #tpu.memory_space<vmem>>) attributes {dimension_semantics = [#tpu.dimension_semantics<parallel>, #tpu.dimension_semantics<parallel>], iteration_bounds = array<i64: 2, 1>, scalar_prefetch = 0 : i64, scratch_operands = 0 : i64, tpu.core_type = #tpu.core_type<tc>, window_params = [{transform_indices = @transform_0, window_bounds = array<i64: 1, 4, 256>}, {pipeline_mode = #tpu.pipeline_mode<synchronous>, transform_indices = @transform_1, window_bounds = array<i64: 8, 4>}, {transform_indices = @transform_2, window_bounds = array<i64: 1, 1, 8, 2>}]} {
    %c0 = arith.constant 0 : index
    %c0_0 = arith.constant 0 : index
    %c0_1 = arith.constant 0 : index
    %0 = vector.load %arg2[%c0, %c0_0, %c0_1] : memref<1x4x256xf32, #tpu.memory_space<vmem>>, vector<1x4x256xf32>
    %1 = vector.shape_cast %0 : vector<1x4x256xf32> to vector<4x256xf32>
    %c0_2 = arith.constant 0 : index
    %c0_3 = arith.constant 0 : index
    %2 = vector.load %arg3[%c0_2, %c0_3] : memref<8x4xf32, #tpu.memory_space<vmem>>, vector<8x4xf32>
    %cst = arith.constant dense<0.000000e+00> : vector<8x256xf32>
    %3 = tpu.matmul %2, %1, %cst {dimension_numbers = #tpu.dot_dimension_numbers<[1], [0], [0], [1], [0, 0, 1, 1], [], []>} : vector<8x4xf32>, vector<4x256xf32>, vector<8x256xf32> -> vector<8x256xf32>
    %cst_4 = arith.constant dense<0.000000e+00> : vector<8xf32>
    %4 = vector.multi_reduction <add>, %3, %cst_4 [1] : vector<8x256xf32> to vector<8xf32>
    %5 = vector.shape_cast %4 : vector<8xf32> to vector<8x1xf32>
    %c0_5 = arith.constant 0 : index
    %c0_6 = arith.constant 0 : index
    %c0_7 = arith.constant 0 : index
    %c0_8 = arith.constant 0 : index
    %6 = vector.load %arg4[%c0_5, %c0_6, %c0_7, %c0_8] : memref<1x1x8x2xf32, #tpu.memory_space<vmem>>, vector<1x1x8x1xf32>
    %7 = vector.shape_cast %6 : vector<1x1x8x1xf32> to vector<8x1xf32>
    %8 = vector.shape_cast %5 : vector<8x1xf32> to vector<1x1x8x1xf32>
    tpu.vector_store %arg4[%c0_5, %c0_6, %c0_7, %c0_8], %8 {strides = array<i32>} : memref<1x1x8x2xf32, #tpu.memory_space<vmem>>, vector<1x1x8x1xf32>,
    %9 = arith.mulf %3, %3 : vector<8x256xf32>
    %cst_9 = arith.constant dense<0.000000e+00> : vector<8xf32>
    %10 = vector.multi_reduction <add>, %9, %cst_9 [1] : vector<8x256xf32> to vector<8xf32>
    %11 = vector.shape_cast %10 : vector<8xf32> to vector<8x1xf32>
    %c0_10 = arith.constant 0 : index
    %c0_11 = arith.constant 0 : index
    %c0_12 = arith.constant 0 : index
    %c1 = arith.constant 1 : index
    %12 = vector.load %arg4[%c0_10, %c0_11, %c0_12, %c1] : memref<1x1x8x2xf32, #tpu.memory_space<vmem>>, vector<1x1x8x1xf32>
    %13 = vector.shape_cast %12 : vector<1x1x8x1xf32> to vector<8x1xf32>
    %14 = vector.shape_cast %11 : vector<8x1xf32> to vector<1x1x8x1xf32>
    tpu.vector_store %arg4[%c0_10, %c0_11, %c0_12, %c1], %14 {strides = array<i32>} : memref<1x1x8x2xf32, #tpu.memory_space<vmem>>, vector<1x1x8x1xf32>,
    return
  }
  func.func @transform_0(%arg0: i32, %arg1: i32) -> (i32, i32, i32) {
    %c0_i32 = arith.constant 0 : i32
    %c0_i32_0 = arith.constant 0 : i32
    return %arg0, %c0_i32, %arg1 : i32, i32, i32
  }
  func.func @transform_1(%arg0: i32, %arg1: i32) -> (i32, i32) {
    %c0_i32 = arith.constant 0 : i32
    %c0_i32_0 = arith.constant 0 : i32
    %c0_i32_1 = arith.constant 0 : i32
    return %c0_i32, %c0_i32_0 : i32, i32
  }
  func.func @transform_2(%arg0: i32, %arg1: i32) -> (i32, i32, i32, i32) {
    %c0_i32 = arith.constant 0 : i32
    %c0_i32_0 = arith.constant 0 : i32
    %c0_i32_1 = arith.constant 0 : i32
    return %arg0, %arg1, %c0_i32, %c0_i32_0 : i32, i32, i32, i32
  }
}

module attributes {stable_mosaic.version = 11 : i64} {
  func.func @_project_kernel(%arg0: i32, %arg1: i32, %arg2: memref<1x8x256xf32, #tpu.memory_space<vmem>>, %arg3: memref<1x8x2xf32, #tpu.memory_space<vmem>>, %arg4: memref<4x8xf32, #tpu.memory_space<vmem>>, %arg5: memref<1x4x256xf32, #tpu.memory_space<vmem>>, %arg6: memref<1x1x4x2xf32, #tpu.memory_space<vmem>>) attributes {dimension_semantics = [#tpu.dimension_semantics<parallel>, #tpu.dimension_semantics<parallel>], iteration_bounds = array<i64: 2, 1>, scalar_prefetch = 0 : i64, scratch_operands = 0 : i64, tpu.core_type = #tpu.core_type<tc>, window_params = [{transform_indices = @transform_0, window_bounds = array<i64: 1, 8, 256>}, {transform_indices = @transform_1, window_bounds = array<i64: 1, 8, 2>}, {pipeline_mode = #tpu.pipeline_mode<synchronous>, transform_indices = @transform_2, window_bounds = array<i64: 4, 8>}, {transform_indices = @transform_3, window_bounds = array<i64: 1, 4, 256>}, {transform_indices = @transform_4, window_bounds = array<i64: 1, 1, 4, 2>}]} {
    %c0 = arith.constant 0 : index
    %c0_0 = arith.constant 0 : index
    %c0_1 = arith.constant 0 : index
    %0 = vector.load %arg3[%c0, %c0_0, %c0_1] : memref<1x8x2xf32, #tpu.memory_space<vmem>>, vector<1x8x1xf32>
    %1 = vector.shape_cast %0 : vector<1x8x1xf32> to vector<8x1xf32>
    %c0_2 = arith.constant 0 : index
    %c0_3 = arith.constant 0 : index
    %c1 = arith.constant 1 : index
    %2 = vector.load %arg3[%c0_2, %c0_3, %c1] : memref<1x8x2xf32, #tpu.memory_space<vmem>>, vector<1x8x1xf32>
    %3 = vector.shape_cast %2 : vector<1x8x1xf32> to vector<8x1xf32>
    %c0_4 = arith.constant 0 : index
    %c0_5 = arith.constant 0 : index
    %c0_6 = arith.constant 0 : index
    %4 = vector.load %arg2[%c0_4, %c0_5, %c0_6] : memref<1x8x256xf32, #tpu.memory_space<vmem>>, vector<1x8x256xf32>
    %5 = vector.shape_cast %4 : vector<1x8x256xf32> to vector<8x256xf32>
    %6 = vector.broadcast %1 : vector<8x1xf32> to vector<8x256xf32>
    %7 = arith.mulf %5, %6 : vector<8x256xf32>
    %8 = vector.broadcast %3 : vector<8x1xf32> to vector<8x256xf32>
    %9 = arith.addf %7, %8 : vector<8x256xf32>
    %cst = arith.constant 2.000000e-01 : f32
    %10 = vector.broadcast %cst : f32 to vector<8x256xf32>
    %11 = arith.mulf %10, %9 : vector<8x256xf32>
    %12 = arith.maximumf %9, %11 : vector<8x256xf32>
    %c0_7 = arith.constant 0 : index
    %c0_8 = arith.constant 0 : index
    %13 = vector.load %arg4[%c0_7, %c0_8] : memref<4x8xf32, #tpu.memory_space<vmem>>, vector<4x8xf32>
    %cst_9 = arith.constant dense<0.000000e+00> : vector<4x256xf32>
    %14 = tpu.matmul %13, %12, %cst_9 {dimension_numbers = #tpu.dot_dimension_numbers<[1], [0], [0], [1], [0, 0, 1, 1], [], []>} : vector<4x8xf32>, vector<8x256xf32>, vector<4x256xf32> -> vector<4x256xf32>
    %c0_10 = arith.constant 0 : index
    %c0_11 = arith.constant 0 : index
    %c0_12 = arith.constant 0 : index
    %15 = vector.load %arg5[%c0_10, %c0_11, %c0_12] : memref<1x4x256xf32, #tpu.memory_space<vmem>>, vector<1x4x256xf32>
    %16 = vector.shape_cast %15 : vector<1x4x256xf32> to vector<4x256xf32>
    %17 = vector.shape_cast %14 : vector<4x256xf32> to vector<1x4x256xf32>
    tpu.vector_store %arg5[%c0_10, %c0_11, %c0_12], %17 {strides = array<i32>} : memref<1x4x256xf32, #tpu.memory_space<vmem>>, vector<1x4x256xf32>,
    %cst_13 = arith.constant dense<0.000000e+00> : vector<4xf32>
    %18 = vector.multi_reduction <add>, %14, %cst_13 [1] : vector<4x256xf32> to vector<4xf32>
    %19 = vector.shape_cast %18 : vector<4xf32> to vector<4x1xf32>
    %c0_14 = arith.constant 0 : index
    %c0_15 = arith.constant 0 : index
    %c0_16 = arith.constant 0 : index
    %c0_17 = arith.constant 0 : index
    %20 = vector.load %arg6[%c0_14, %c0_15, %c0_16, %c0_17] : memref<1x1x4x2xf32, #tpu.memory_space<vmem>>, vector<1x1x4x1xf32>
    %21 = vector.shape_cast %20 : vector<1x1x4x1xf32> to vector<4x1xf32>
    %22 = vector.shape_cast %19 : vector<4x1xf32> to vector<1x1x4x1xf32>
    tpu.vector_store %arg6[%c0_14, %c0_15, %c0_16, %c0_17], %22 {strides = array<i32>} : memref<1x1x4x2xf32, #tpu.memory_space<vmem>>, vector<1x1x4x1xf32>,
    %23 = arith.mulf %14, %14 : vector<4x256xf32>
    %cst_18 = arith.constant dense<0.000000e+00> : vector<4xf32>
    %24 = vector.multi_reduction <add>, %23, %cst_18 [1] : vector<4x256xf32> to vector<4xf32>
    %25 = vector.shape_cast %24 : vector<4xf32> to vector<4x1xf32>
    %c0_19 = arith.constant 0 : index
    %c0_20 = arith.constant 0 : index
    %c0_21 = arith.constant 0 : index
    %c1_22 = arith.constant 1 : index
    %26 = vector.load %arg6[%c0_19, %c0_20, %c0_21, %c1_22] : memref<1x1x4x2xf32, #tpu.memory_space<vmem>>, vector<1x1x4x1xf32>
    %27 = vector.shape_cast %26 : vector<1x1x4x1xf32> to vector<4x1xf32>
    %28 = vector.shape_cast %25 : vector<4x1xf32> to vector<1x1x4x1xf32>
    tpu.vector_store %arg6[%c0_19, %c0_20, %c0_21, %c1_22], %28 {strides = array<i32>} : memref<1x1x4x2xf32, #tpu.memory_space<vmem>>, vector<1x1x4x1xf32>,
    return
  }
  func.func @transform_0(%arg0: i32, %arg1: i32) -> (i32, i32, i32) {
    %c0_i32 = arith.constant 0 : i32
    %c0_i32_0 = arith.constant 0 : i32
    return %arg0, %c0_i32, %arg1 : i32, i32, i32
  }
  func.func @transform_1(%arg0: i32, %arg1: i32) -> (i32, i32, i32) {
    %c0_i32 = arith.constant 0 : i32
    %c0_i32_0 = arith.constant 0 : i32
    %c0_i32_1 = arith.constant 0 : i32
    return %arg0, %c0_i32, %c0_i32_0 : i32, i32, i32
  }
  func.func @transform_2(%arg0: i32, %arg1: i32) -> (i32, i32) {
    %c0_i32 = arith.constant 0 : i32
    %c0_i32_0 = arith.constant 0 : i32
    %c0_i32_1 = arith.constant 0 : i32
    return %c0_i32, %c0_i32_0 : i32, i32
  }
  func.func @transform_3(%arg0: i32, %arg1: i32) -> (i32, i32, i32) {
    %c0_i32 = arith.constant 0 : i32
    %c0_i32_0 = arith.constant 0 : i32
    return %arg0, %c0_i32, %arg1 : i32, i32, i32
  }
  func.func @transform_4(%arg0: i32, %arg1: i32) -> (i32, i32, i32, i32) {
    %c0_i32 = arith.constant 0 : i32
    %c0_i32_0 = arith.constant 0 : i32
    %c0_i32_1 = arith.constant 0 : i32
    return %arg0, %arg1, %c0_i32, %c0_i32_0 : i32, i32, i32, i32
  }
}

module attributes {stable_mosaic.version = 11 : i64} {
  func.func @_expand_dw_kernel(%arg0: i32, %arg1: i32, %arg2: memref<1x1x4x288xf32, #tpu.memory_space<vmem>>, %arg3: memref<8x4xf32, #tpu.memory_space<vmem>>, %arg4: memref<1x8x2xf32, #tpu.memory_space<vmem>>, %arg5: memref<8x10xf32, #tpu.memory_space<vmem>>, %arg6: memref<1x8x256xf32, #tpu.memory_space<vmem>>, %arg7: memref<1x1x8x2xf32, #tpu.memory_space<vmem>>) attributes {dimension_semantics = [#tpu.dimension_semantics<parallel>, #tpu.dimension_semantics<parallel>], iteration_bounds = array<i64: 2, 1>, scalar_prefetch = 0 : i64, scratch_operands = 0 : i64, tpu.core_type = #tpu.core_type<tc>, window_params = [{transform_indices = @transform_0, window_bounds = array<i64: 1, 1, 4, 288>}, {pipeline_mode = #tpu.pipeline_mode<synchronous>, transform_indices = @transform_1, window_bounds = array<i64: 8, 4>}, {transform_indices = @transform_2, window_bounds = array<i64: 1, 8, 2>}, {pipeline_mode = #tpu.pipeline_mode<synchronous>, transform_indices = @transform_3, window_bounds = array<i64: 8, 10>}, {transform_indices = @transform_4, window_bounds = array<i64: 1, 8, 256>}, {transform_indices = @transform_5, window_bounds = array<i64: 1, 1, 8, 2>}]} {
    %c0 = arith.constant 0 : index
    %c0_0 = arith.constant 0 : index
    %c0_1 = arith.constant 0 : index
    %c0_2 = arith.constant 0 : index
    %0 = vector.load %arg2[%c0, %c0_0, %c0_1, %c0_2] : memref<1x1x4x288xf32, #tpu.memory_space<vmem>>, vector<1x1x4x288xf32>
    %1 = vector.shape_cast %0 : vector<1x1x4x288xf32> to vector<4x288xf32>
    %c0_3 = arith.constant 0 : index
    %c0_4 = arith.constant 0 : index
    %2 = vector.load %arg3[%c0_3, %c0_4] : memref<8x4xf32, #tpu.memory_space<vmem>>, vector<8x4xf32>
    %cst = arith.constant dense<0.000000e+00> : vector<8x288xf32>
    %3 = tpu.matmul %2, %1, %cst {dimension_numbers = #tpu.dot_dimension_numbers<[1], [0], [0], [1], [0, 0, 1, 1], [], []>} : vector<8x4xf32>, vector<4x288xf32>, vector<8x288xf32> -> vector<8x288xf32>
    %c0_5 = arith.constant 0 : index
    %c0_6 = arith.constant 0 : index
    %c0_7 = arith.constant 0 : index
    %4 = vector.load %arg4[%c0_5, %c0_6, %c0_7] : memref<1x8x2xf32, #tpu.memory_space<vmem>>, vector<1x8x1xf32>
    %5 = vector.shape_cast %4 : vector<1x8x1xf32> to vector<8x1xf32>
    %c0_8 = arith.constant 0 : index
    %c0_9 = arith.constant 0 : index
    %c1 = arith.constant 1 : index
    %6 = vector.load %arg4[%c0_8, %c0_9, %c1] : memref<1x8x2xf32, #tpu.memory_space<vmem>>, vector<1x8x1xf32>
    %7 = vector.shape_cast %6 : vector<1x8x1xf32> to vector<8x1xf32>
    %8 = vector.broadcast %5 : vector<8x1xf32> to vector<8x288xf32>
    %9 = arith.mulf %3, %8 : vector<8x288xf32>
    %10 = vector.broadcast %7 : vector<8x1xf32> to vector<8x288xf32>
    %11 = arith.addf %9, %10 : vector<8x288xf32>
    %cst_10 = arith.constant 2.000000e-01 : f32
    %12 = vector.broadcast %cst_10 : f32 to vector<8x288xf32>
    %13 = arith.mulf %12, %11 : vector<8x288xf32>
    %14 = arith.maximumf %11, %13 : vector<8x288xf32>
    %15 = vector.extract_strided_slice %14 {offsets = [0, 0], sizes = [8, 256], strides = [1, 1]} : vector<8x288xf32> to vector<8x256xf32>
    %16 = vector.extract_strided_slice %14 {offsets = [0, 16], sizes = [8, 256], strides = [1, 1]} : vector<8x288xf32> to vector<8x256xf32>
    %17 = vector.extract_strided_slice %14 {offsets = [0, 32], sizes = [8, 256], strides = [1, 1]} : vector<8x288xf32> to vector<8x256xf32>
    %18 = tpu.iota {dimensions = array<i32: 1>} : vector<1x256xi32>
    %c16_i32 = arith.constant 16 : i32
    %c0_i32 = arith.constant 0 : i32
    %19 = arith.cmpi eq, %c16_i32, %c0_i32 : i32
    %c1_i32 = arith.constant 1 : i32
    %20 = arith.select %19, %c1_i32, %c16_i32 : i32
    %21 = vector.broadcast %20 : i32 to vector<1x256xi32>
    %22 = arith.remsi %18, %21 : vector<1x256xi32>
    %c0_i32_11 = arith.constant 0 : i32
    %23 = vector.broadcast %c0_i32_11 : i32 to vector<1x256xi32>
    %24 = arith.cmpi ne, %22, %23 : vector<1x256xi32>
    %c0_i32_12 = arith.constant 0 : i32
    %25 = vector.broadcast %c0_i32_12 : i32 to vector<1x256xi32>
    %26 = arith.cmpi slt, %22, %25 : vector<1x256xi32>
    %c0_i32_13 = arith.constant 0 : i32
    %27 = arith.cmpi slt, %20, %c0_i32_13 : i32
    %28 = vector.broadcast %27 : i1 to vector<1x256xi1>
    %29 = vector.broadcast %28 : vector<1x256xi1> to vector<1x256xi1>
    %30 = arith.xori %26, %29 : vector<1x256xi1>
    %31 = arith.andi %30, %24 : vector<1x256xi1>
    %32 = vector.broadcast %20 : i32 to vector<1x256xi32>
    %33 = arith.addi %22, %32 : vector<1x256xi32>
    %34 = arith.select %31, %33, %22 : vector<1x256xi1>, vector<1x256xi32>
    %c0_i32_14 = arith.constant 0 : i32
    %35 = vector.broadcast %c0_i32_14 : i32 to vector<1x256xi32>
    %36 = arith.cmpi eq, %34, %35 : vector<1x256xi32>
    %c15_i32 = arith.constant 15 : i32
    %37 = vector.broadcast %c15_i32 : i32 to vector<1x256xi32>
    %38 = arith.cmpi eq, %34, %37 : vector<1x256xi32>
    %c0_15 = arith.constant 0 : index
    %c0_16 = arith.constant 0 : index
    %39 = vector.load %arg5[%c0_15, %c0_16] : memref<8x10xf32, #tpu.memory_space<vmem>>, vector<8x1xf32>
    %c0_17 = arith.constant 0 : index
    %c1_18 = arith.constant 1 : index
    %40 = vector.load %arg5[%c0_17, %c1_18] : memref<8x10xf32, #tpu.memory_space<vmem>>, vector<8x1xf32>
    %c0_19 = arith.constant 0 : index
    %c2 = arith.constant 2 : index
    %41 = vector.load %arg5[%c0_19, %c2] : memref<8x10xf32, #tpu.memory_space<vmem>>, vector<8x1xf32>
    %c0_20 = arith.constant 0 : index
    %c3 = arith.constant 3 : index
    %42 = vector.load %arg5[%c0_20, %c3] : memref<8x10xf32, #tpu.memory_space<vmem>>, vector<8x1xf32>
    %c0_21 = arith.constant 0 : index
    %c4 = arith.constant 4 : index
    %43 = vector.load %arg5[%c0_21, %c4] : memref<8x10xf32, #tpu.memory_space<vmem>>, vector<8x1xf32>
    %c0_22 = arith.constant 0 : index
    %c5 = arith.constant 5 : index
    %44 = vector.load %arg5[%c0_22, %c5] : memref<8x10xf32, #tpu.memory_space<vmem>>, vector<8x1xf32>
    %c0_23 = arith.constant 0 : index
    %c6 = arith.constant 6 : index
    %45 = vector.load %arg5[%c0_23, %c6] : memref<8x10xf32, #tpu.memory_space<vmem>>, vector<8x1xf32>
    %c0_24 = arith.constant 0 : index
    %c7 = arith.constant 7 : index
    %46 = vector.load %arg5[%c0_24, %c7] : memref<8x10xf32, #tpu.memory_space<vmem>>, vector<8x1xf32>
    %c0_25 = arith.constant 0 : index
    %c8 = arith.constant 8 : index
    %47 = vector.load %arg5[%c0_25, %c8] : memref<8x10xf32, #tpu.memory_space<vmem>>, vector<8x1xf32>
    %c0_26 = arith.constant 0 : index
    %c9 = arith.constant 9 : index
    %48 = vector.load %arg5[%c0_26, %c9] : memref<8x10xf32, #tpu.memory_space<vmem>>, vector<8x1xf32>
    %c1_i32_27 = arith.constant 1 : i32
    %49 = tpu.dynamic_rotate %15 by %c1_i32_27 dim 1 : vector<8x256xf32>, i32 -> vector<8x256xf32>
    %c255_i32 = arith.constant 255 : i32
    %50 = tpu.dynamic_rotate %15 by %c255_i32 dim 1 : vector<8x256xf32>, i32 -> vector<8x256xf32>
    %51 = vector.shape_cast %36 : vector<1x256xi1> to vector<1x256xi1>
    %52 = vector.broadcast %51 : vector<1x256xi1> to vector<8x256xi1>
    %53 = arith.select %52, %50, %49 : vector<8x256xi1>, vector<8x256xf32>
    %54 = vector.shape_cast %38 : vector<1x256xi1> to vector<1x256xi1>
    %55 = vector.broadcast %54 : vector<1x256xi1> to vector<8x256xi1>
    %56 = arith.select %55, %49, %50 : vector<8x256xi1>, vector<8x256xf32>
    %57 = vector.broadcast %39 : vector<8x1xf32> to vector<8x256xf32>
    %58 = arith.mulf %53, %57 : vector<8x256xf32>
    %59 = vector.broadcast %40 : vector<8x1xf32> to vector<8x256xf32>
    %60 = arith.mulf %15, %59 : vector<8x256xf32>
    %61 = arith.addf %58, %60 : vector<8x256xf32>
    %62 = vector.broadcast %41 : vector<8x1xf32> to vector<8x256xf32>
    %63 = arith.mulf %56, %62 : vector<8x256xf32>
    %64 = arith.addf %61, %63 : vector<8x256xf32>
    %c1_i32_28 = arith.constant 1 : i32
    %65 = tpu.dynamic_rotate %16 by %c1_i32_28 dim 1 : vector<8x256xf32>, i32 -> vector<8x256xf32>
    %c255_i32_29 = arith.constant 255 : i32
    %66 = tpu.dynamic_rotate %16 by %c255_i32_29 dim 1 : vector<8x256xf32>, i32 -> vector<8x256xf32>
    %67 = vector.shape_cast %36 : vector<1x256xi1> to vector<1x256xi1>
    %68 = vector.broadcast %67 : vector<1x256xi1> to vector<8x256xi1>
    %69 = arith.select %68, %66, %65 : vector<8x256xi1>, vector<8x256xf32>
    %70 = vector.shape_cast %38 : vector<1x256xi1> to vector<1x256xi1>
    %71 = vector.broadcast %70 : vector<1x256xi1> to vector<8x256xi1>
    %72 = arith.select %71, %65, %66 : vector<8x256xi1>, vector<8x256xf32>
    %73 = vector.broadcast %42 : vector<8x1xf32> to vector<8x256xf32>
    %74 = arith.mulf %69, %73 : vector<8x256xf32>
    %75 = vector.broadcast %43 : vector<8x1xf32> to vector<8x256xf32>
    %76 = arith.mulf %16, %75 : vector<8x256xf32>
    %77 = arith.addf %74, %76 : vector<8x256xf32>
    %78 = vector.broadcast %44 : vector<8x1xf32> to vector<8x256xf32>
    %79 = arith.mulf %72, %78 : vector<8x256xf32>
    %80 = arith.addf %77, %79 : vector<8x256xf32>
    %81 = arith.addf %64, %80 : vector<8x256xf32>
    %c1_i32_30 = arith.constant 1 : i32
    %82 = tpu.dynamic_rotate %17 by %c1_i32_30 dim 1 : vector<8x256xf32>, i32 -> vector<8x256xf32>
    %c255_i32_31 = arith.constant 255 : i32
    %83 = tpu.dynamic_rotate %17 by %c255_i32_31 dim 1 : vector<8x256xf32>, i32 -> vector<8x256xf32>
    %84 = vector.shape_cast %36 : vector<1x256xi1> to vector<1x256xi1>
    %85 = vector.broadcast %84 : vector<1x256xi1> to vector<8x256xi1>
    %86 = arith.select %85, %83, %82 : vector<8x256xi1>, vector<8x256xf32>
    %87 = vector.shape_cast %38 : vector<1x256xi1> to vector<1x256xi1>
    %88 = vector.broadcast %87 : vector<1x256xi1> to vector<8x256xi1>
    %89 = arith.select %88, %82, %83 : vector<8x256xi1>, vector<8x256xf32>
    %90 = vector.broadcast %45 : vector<8x1xf32> to vector<8x256xf32>
    %91 = arith.mulf %86, %90 : vector<8x256xf32>
    %92 = vector.broadcast %46 : vector<8x1xf32> to vector<8x256xf32>
    %93 = arith.mulf %17, %92 : vector<8x256xf32>
    %94 = arith.addf %91, %93 : vector<8x256xf32>
    %95 = vector.broadcast %47 : vector<8x1xf32> to vector<8x256xf32>
    %96 = arith.mulf %89, %95 : vector<8x256xf32>
    %97 = arith.addf %94, %96 : vector<8x256xf32>
    %98 = arith.addf %81, %97 : vector<8x256xf32>
    %99 = vector.broadcast %48 : vector<8x1xf32> to vector<8x256xf32>
    %100 = arith.addf %98, %99 : vector<8x256xf32>
    %c0_32 = arith.constant 0 : index
    %c0_33 = arith.constant 0 : index
    %c0_34 = arith.constant 0 : index
    %101 = vector.load %arg6[%c0_32, %c0_33, %c0_34] : memref<1x8x256xf32, #tpu.memory_space<vmem>>, vector<1x8x256xf32>
    %102 = vector.shape_cast %101 : vector<1x8x256xf32> to vector<8x256xf32>
    %103 = vector.shape_cast %100 : vector<8x256xf32> to vector<1x8x256xf32>
    tpu.vector_store %arg6[%c0_32, %c0_33, %c0_34], %103 {strides = array<i32>} : memref<1x8x256xf32, #tpu.memory_space<vmem>>, vector<1x8x256xf32>,
    %cst_35 = arith.constant dense<0.000000e+00> : vector<8xf32>
    %104 = vector.multi_reduction <add>, %100, %cst_35 [1] : vector<8x256xf32> to vector<8xf32>
    %105 = vector.shape_cast %104 : vector<8xf32> to vector<8x1xf32>
    %c0_36 = arith.constant 0 : index
    %c0_37 = arith.constant 0 : index
    %c0_38 = arith.constant 0 : index
    %c0_39 = arith.constant 0 : index
    %106 = vector.load %arg7[%c0_36, %c0_37, %c0_38, %c0_39] : memref<1x1x8x2xf32, #tpu.memory_space<vmem>>, vector<1x1x8x1xf32>
    %107 = vector.shape_cast %106 : vector<1x1x8x1xf32> to vector<8x1xf32>
    %108 = vector.shape_cast %105 : vector<8x1xf32> to vector<1x1x8x1xf32>
    tpu.vector_store %arg7[%c0_36, %c0_37, %c0_38, %c0_39], %108 {strides = array<i32>} : memref<1x1x8x2xf32, #tpu.memory_space<vmem>>, vector<1x1x8x1xf32>,
    %109 = arith.mulf %100, %100 : vector<8x256xf32>
    %cst_40 = arith.constant dense<0.000000e+00> : vector<8xf32>
    %110 = vector.multi_reduction <add>, %109, %cst_40 [1] : vector<8x256xf32> to vector<8xf32>
    %111 = vector.shape_cast %110 : vector<8xf32> to vector<8x1xf32>
    %c0_41 = arith.constant 0 : index
    %c0_42 = arith.constant 0 : index
    %c0_43 = arith.constant 0 : index
    %c1_44 = arith.constant 1 : index
    %112 = vector.load %arg7[%c0_41, %c0_42, %c0_43, %c1_44] : memref<1x1x8x2xf32, #tpu.memory_space<vmem>>, vector<1x1x8x1xf32>
    %113 = vector.shape_cast %112 : vector<1x1x8x1xf32> to vector<8x1xf32>
    %114 = vector.shape_cast %111 : vector<8x1xf32> to vector<1x1x8x1xf32>
    tpu.vector_store %arg7[%c0_41, %c0_42, %c0_43, %c1_44], %114 {strides = array<i32>} : memref<1x1x8x2xf32, #tpu.memory_space<vmem>>, vector<1x1x8x1xf32>,
    return
  }
  func.func @transform_0(%arg0: i32, %arg1: i32) -> (i32, i32, i32, i32) {
    %c0_i32 = arith.constant 0 : i32
    %c0_i32_0 = arith.constant 0 : i32
    %c0_i32_1 = arith.constant 0 : i32
    return %arg0, %arg1, %c0_i32, %c0_i32_0 : i32, i32, i32, i32
  }
  func.func @transform_1(%arg0: i32, %arg1: i32) -> (i32, i32) {
    %c0_i32 = arith.constant 0 : i32
    %c0_i32_0 = arith.constant 0 : i32
    %c0_i32_1 = arith.constant 0 : i32
    return %c0_i32, %c0_i32_0 : i32, i32
  }
  func.func @transform_2(%arg0: i32, %arg1: i32) -> (i32, i32, i32) {
    %c0_i32 = arith.constant 0 : i32
    %c0_i32_0 = arith.constant 0 : i32
    %c0_i32_1 = arith.constant 0 : i32
    return %arg0, %c0_i32, %c0_i32_0 : i32, i32, i32
  }
  func.func @transform_3(%arg0: i32, %arg1: i32) -> (i32, i32) {
    %c0_i32 = arith.constant 0 : i32
    %c0_i32_0 = arith.constant 0 : i32
    %c0_i32_1 = arith.constant 0 : i32
    return %c0_i32, %c0_i32_0 : i32, i32
  }
  func.func @transform_4(%arg0: i32, %arg1: i32) -> (i32, i32, i32) {
    %c0_i32 = arith.constant 0 : i32
    %c0_i32_0 = arith.constant 0 : i32
    return %arg0, %c0_i32, %arg1 : i32, i32, i32
  }
  func.func @transform_5(%arg0: i32, %arg1: i32) -> (i32, i32, i32, i32) {
    %c0_i32 = arith.constant 0 : i32
    %c0_i32_0 = arith.constant 0 : i32
    %c0_i32_1 = arith.constant 0 : i32
    return %arg0, %arg1, %c0_i32, %c0_i32_0 : i32, i32, i32, i32
  }
}

module attributes {stable_mosaic.version = 11 : i64} {
  func.func @_finish_kernel(%arg0: i32, %arg1: i32, %arg2: memref<1x4x256xf32, #tpu.memory_space<vmem>>, %arg3: memref<1x4x256xf32, #tpu.memory_space<vmem>>, %arg4: memref<1x4x2xf32, #tpu.memory_space<vmem>>, %arg5: memref<1x4x256xf32, #tpu.memory_space<vmem>>) attributes {dimension_semantics = [#tpu.dimension_semantics<parallel>, #tpu.dimension_semantics<parallel>], iteration_bounds = array<i64: 2, 1>, scalar_prefetch = 0 : i64, scratch_operands = 0 : i64, tpu.core_type = #tpu.core_type<tc>, window_params = [{transform_indices = @transform_0, window_bounds = array<i64: 1, 4, 256>}, {transform_indices = @transform_1, window_bounds = array<i64: 1, 4, 256>}, {transform_indices = @transform_2, window_bounds = array<i64: 1, 4, 2>}, {transform_indices = @transform_3, window_bounds = array<i64: 1, 4, 256>}]} {
    %c0 = arith.constant 0 : index
    %c0_0 = arith.constant 0 : index
    %c0_1 = arith.constant 0 : index
    %0 = vector.load %arg4[%c0, %c0_0, %c0_1] : memref<1x4x2xf32, #tpu.memory_space<vmem>>, vector<1x4x1xf32>
    %1 = vector.shape_cast %0 : vector<1x4x1xf32> to vector<4x1xf32>
    %c0_2 = arith.constant 0 : index
    %c0_3 = arith.constant 0 : index
    %c1 = arith.constant 1 : index
    %2 = vector.load %arg4[%c0_2, %c0_3, %c1] : memref<1x4x2xf32, #tpu.memory_space<vmem>>, vector<1x4x1xf32>
    %3 = vector.shape_cast %2 : vector<1x4x1xf32> to vector<4x1xf32>
    %c0_4 = arith.constant 0 : index
    %c0_5 = arith.constant 0 : index
    %c0_6 = arith.constant 0 : index
    %4 = vector.load %arg2[%c0_4, %c0_5, %c0_6] : memref<1x4x256xf32, #tpu.memory_space<vmem>>, vector<1x4x256xf32>
    %5 = vector.shape_cast %4 : vector<1x4x256xf32> to vector<4x256xf32>
    %6 = vector.broadcast %1 : vector<4x1xf32> to vector<4x256xf32>
    %7 = arith.mulf %5, %6 : vector<4x256xf32>
    %8 = vector.broadcast %3 : vector<4x1xf32> to vector<4x256xf32>
    %9 = arith.addf %7, %8 : vector<4x256xf32>
    %c0_7 = arith.constant 0 : index
    %c0_8 = arith.constant 0 : index
    %c0_9 = arith.constant 0 : index
    %10 = vector.load %arg3[%c0_7, %c0_8, %c0_9] : memref<1x4x256xf32, #tpu.memory_space<vmem>>, vector<1x4x256xf32>
    %11 = vector.shape_cast %10 : vector<1x4x256xf32> to vector<4x256xf32>
    %12 = arith.addf %9, %11 : vector<4x256xf32>
    %c0_10 = arith.constant 0 : index
    %c0_11 = arith.constant 0 : index
    %c0_12 = arith.constant 0 : index
    %13 = vector.load %arg5[%c0_10, %c0_11, %c0_12] : memref<1x4x256xf32, #tpu.memory_space<vmem>>, vector<1x4x256xf32>
    %14 = vector.shape_cast %13 : vector<1x4x256xf32> to vector<4x256xf32>
    %15 = vector.shape_cast %12 : vector<4x256xf32> to vector<1x4x256xf32>
    tpu.vector_store %arg5[%c0_10, %c0_11, %c0_12], %15 {strides = array<i32>} : memref<1x4x256xf32, #tpu.memory_space<vmem>>, vector<1x4x256xf32>,
    return
  }
  func.func @transform_0(%arg0: i32, %arg1: i32) -> (i32, i32, i32) {
    %c0_i32 = arith.constant 0 : i32
    %c0_i32_0 = arith.constant 0 : i32
    return %arg0, %c0_i32, %arg1 : i32, i32, i32
  }
  func.func @transform_1(%arg0: i32, %arg1: i32) -> (i32, i32, i32) {
    %c0_i32 = arith.constant 0 : i32
    %c0_i32_0 = arith.constant 0 : i32
    return %arg0, %c0_i32, %arg1 : i32, i32, i32
  }
  func.func @transform_2(%arg0: i32, %arg1: i32) -> (i32, i32, i32) {
    %c0_i32 = arith.constant 0 : i32
    %c0_i32_0 = arith.constant 0 : i32
    %c0_i32_1 = arith.constant 0 : i32
    return %arg0, %c0_i32, %c0_i32_0 : i32, i32, i32
  }
  func.func @transform_3(%arg0: i32, %arg1: i32) -> (i32, i32, i32) {
    %c0_i32 = arith.constant 0 : i32
    %c0_i32_0 = arith.constant 0 : i32
    return %arg0, %c0_i32, %arg1 : i32, i32, i32
  }
}

</mosaic_0001>

<llo_original>
// kernel: _lambda_.6
$region0: #{_lambda_.6}
  #allocation0 [shape = 'u32[]', space=smem, size = 0x4, offset = 0x4, fixed_abs, tag = 'smem constant byte address 0x4 - core index']
  #allocation1 [shape = 'u32[144,128]{1,0:T(1,128)}', space=vmem, size = 0x12000, scoped, tag = 'internal scratch']
  %s0 = inlined_call_operand.vmem [shape: f32[2,8,256], index: 0, kind: input, shape index: {}]
  %s1 = inlined_call_operand.vmem [shape: f32[2,8,2], index: 1, kind: input, shape index: {}]
  %s2 = inlined_call_operand.vmem [shape: f32[4,8], index: 2, kind: input, shape index: {}]
  %s3 = inlined_call_operand.vmem [shape: f32[2,4,256], index: 3, kind: output, shape index: {0}]
  %s4 = inlined_call_operand.vmem [shape: f32[2,1,4,2], index: 4, kind: output, shape index: {1}]
  %5 = xla_tuple %s3, %s4
  %s6 = sld [smem:[#allocation0]]
  $region53: #{_lambda_.6} parent=0
    _
  %s8 = ssub.s32 1, %s6
  %s9 = scalar_select 0, %s8, %s6
  loop: start=0, step=1, limit=4
  $region2: #{_lambda_.6} parent=0 // loop_pre_header
    _
  $region3: #{_lambda_.6} parent=0 // loop_header
    %s11 = sphi 0, %s15
    %p12 = scmp.ge.s32.totalorder %s11, 4
    %s18 = sphi 0, %s30
    %s19 = sphi 0, %s26
    %s20 = sphi 0, %s18
    %s21 = sphi 0, %s19
    %s22 = sphi 0, %s20
    %s23 = sphi 0, %s21
    %s35 = sphi 0, %s37
    %s38 = sphi 0, %s35
    %s39 = sphi 0, %s38
    %s55 = sphi 0, %s39
    %s61 = sphi 0, %s63
    %s64 = sphi 0, %s61
    %s65 = sphi 0, %s64
    %s81 = sphi 0, %s65
    %s85 = sphi 0, %s85
    %s87 = sphi 0, %s85
    %s88 = sphi 0, %s87
    %s102 = sphi 0, %s88
    %s110 = sphi 0, %s112
    %s113 = sphi 0, %s110
    %s114 = sphi 0, %s113
    %s130 = sphi 0, %s114
    %s138 = sphi 0, %s140
    %s141 = sphi 0, %s138
    %s142 = sphi 0, %s141
    %s158 = sphi 0, %s142
  $region4: #{_lambda_.6} parent=0 // loop_header_branch
    %14 = sbr.rel (%p12) target = $region8
  $region5: #{_lambda_.6} parent=0 // loop_body
    %s16 = ssub.s32 %s11, 1
    %s17 = ssub.s32 %s11, 2
    %s24 = sadd.s32 1, %s19
    %p25 = scmp.ge.s32.totalorder %s24, 1
    %s26 = scalar_select %p25, 0, %s24
    %s27 = sadd.s32 1, %s18
    %s28 = scalar_select %p25, %s27, %s18
    %p29 = scmp.ge.s32.totalorder %s28, 2
    %s30 = scalar_select %p29, 0, %s28
    %s31 = ssub.s32 %s18, %s30
    %s32 = ssub.s32 %s19, %s26
    %s33 = sor.u32 %s31, %s32
    %p34 = scmp.eq.s32.totalorder %s33, 0
    %s36 = sadd.s32 %s35, 1
    %s37 = scalar_select %p34, %s35, %s36
    %p40 = pneg %p34
    %p41 = scmp.eq.s32.totalorder %s11, 1
    %p42 = por %p40, %p41
    %p43 = scmp.ne.s32.totalorder %s35, %s38
    %p44 = scmp.eq.s32.totalorder %s11, 0
    %p45 = por %p43, %p44
    %p46 = scmp.ne.s32.totalorder %s35, %s38
    %p47 = scmp.eq.s32.totalorder %s16, 1
    %p48 = por %p46, %p47
    %p49 = scmp.ne.s32.totalorder %s38, %s39
    %p50 = scmp.eq.s32.totalorder %s16, 0
    %p51 = por %p49, %p50
    %p52 = scmp.ne.s32.totalorder %s38, %s39
    %p53 = scmp.eq.s32.totalorder %s17, 1
    %p54 = por %p52, %p53
    %p56 = scmp.ne.s32.totalorder %s39, %s55
    %p57 = scmp.eq.s32.totalorder %s17, 0
    %p58 = por %p56, %p57
    %s59 = ssub.s32 %s18, %s30
    %p60 = scmp.eq.s32.totalorder %s59, 0
    %s62 = sadd.s32 %s61, 1
    %s63 = scalar_select %p60, %s61, %s62
    %p66 = pneg %p60
    %p67 = scmp.eq.s32.totalorder %s11, 1
    %p68 = por %p66, %p67
    %p69 = scmp.ne.s32.totalorder %s61, %s64
    %p70 = scmp.eq.s32.totalorder %s11, 0
    %p71 = por %p69, %p70
    %p72 = scmp.ne.s32.totalorder %s61, %s64
    %p73 = scmp.eq.s32.totalorder %s16, 1
    %p74 = por %p72, %p73
    %p75 = scmp.ne.s32.totalorder %s64, %s65
    %p76 = scmp.eq.s32.totalorder %s16, 0
    %p77 = por %p75, %p76
    %p78 = scmp.ne.s32.totalorder %s64, %s65
    %p79 = scmp.eq.s32.totalorder %s17, 1
    %p80 = por %p78, %p79
    %p82 = scmp.ne.s32.totalorder %s65, %s81
    %p83 = scmp.eq.s32.totalorder %s17, 0
    %p84 = por %p82, %p83
    %s86 = sadd.s32 %s85, 1
    %p89 = scmp.eq.s32.totalorder %s11, 1
    %p90 = scmp.ne.s32.totalorder %s85, %s87
    %p91 = scmp.eq.s32.totalorder %s11, 0
    %p92 = por %p90, %p91
    %p93 = scmp.ne.s32.totalorder %s85, %s87
    %p94 = scmp.eq.s32.totalorder %s16, 1
    %p95 = por %p93, %p94
    %p96 = scmp.ne.s32.totalorder %s87, %s88
    %p97 = scmp.eq.s32.totalorder %s16, 0
    %p98 = por %p96, %p97
    %p99 = scmp.ne.s32.totalorder %s87, %s88
    %p100 = scmp.eq.s32.totalorder %s17, 1
    %p101 = por %p99, %p100
    %p103 = scmp.ne.s32.totalorder %s88, %s102
    %p104 = scmp.eq.s32.totalorder %s17, 0
    %p105 = por %p103, %p104
    %s106 = ssub.s32 %s18, %s30
    %s107 = ssub.s32 %s19, %s26
    %s108 = sor.u32 %s106, %s107
    %p109 = scmp.eq.s32.totalorder %s108, 0
    %s111 = sadd.s32 %s110, 1
    %s112 = scalar_select %p109, %s110, %s111
    %p115 = pneg %p109
    %p116 = scmp.eq.s32.totalorder %s11, 1
    %p117 = por %p115, %p116
    %p118 = scmp.ne.s32.totalorder %s110, %s113
    %p119 = scmp.eq.s32.totalorder %s11, 0
    %p120 = por %p118, %p119
    %p121 = scmp.ne.s32.totalorder %s110, %s113
    %p122 = scmp.eq.s32.totalorder %s16, 1
    %p123 = por %p121, %p122
    %p124 = scmp.ne.s32.totalorder %s113, %s114
    %p125 = scmp.eq.s32.totalorder %s16, 0
    %p126 = por %p124, %p125
    %p127 = scmp.ne.s32.totalorder %s113, %s114
    %p128 = scmp.eq.s32.totalorder %s17, 1
    %p129 = por %p127, %p128
    %p131 = scmp.ne.s32.totalorder %s114, %s130
    %p132 = scmp.eq.s32.totalorder %s17, 0
    %p133 = por %p131, %p132
    %s134 = ssub.s32 %s18, %s30
    %s135 = ssub.s32 %s19, %s26
    %s136 = sor.u32 %s134, %s135
    %p137 = scmp.eq.s32.totalorder %s136, 0
    %s139 = sadd.s32 %s138, 1
    %s140 = scalar_select %p137, %s138, %s139
    %p143 = pneg %p137
    %p144 = scmp.eq.s32.totalorder %s11, 1
    %p145 = por %p143, %p144
    %p146 = scmp.ne.s32.totalorder %s138, %s141
    %p147 = scmp.eq.s32.totalorder %s11, 0
    %p148 = por %p146, %p147
    %p149 = scmp.ne.s32.totalorder %s138, %s141
    %p150 = scmp.eq.s32.totalorder %s16, 1
    %p151 = por %p149, %p150
    %p152 = scmp.ne.s32.totalorder %s141, %s142
    %p153 = scmp.eq.s32.totalorder %s16, 0
    %p154 = por %p152, %p153
    %p155 = scmp.ne.s32.totalorder %s141, %s142
    %p156 = scmp.eq.s32.totalorder %s17, 1
    %p157 = por %p155, %p156
    %p159 = scmp.ne.s32.totalorder %s142, %s158
    %p160 = scmp.eq.s32.totalorder %s17, 0
    %p161 = por %p159, %p160
    %p162 = scmp.le.s32.totalorder 1, %s11
    %p163 = scmp.lt.s32.totalorder %s11, 3
    %p164 = pnand %p162, %p163
    %p165 = pneg %p164
    // Predicated region
    $region9: #{_lambda_.6} parent=5 // pred_check
      _
    $region10: #{_lambda_.6} parent=5 // pred_check_branch
      %167 = sbr.rel (%p164) target = $region12
    $region11: #{_lambda_.6} parent=5 // pred_region
      %s168 = ssub.s32 %s11, 1
      // Predicated region
      $region13: #{_lambda_.6} parent=11 // pred_check
        %p169 = pneg %p98
      $region14: #{_lambda_.6} parent=11 // pred_check_branch
        %171 = sbr.rel (%p169) target = $region16
      $region15: #{_lambda_.6} parent=11 // pred_region
        _
      $region16: #{_lambda_.6} parent=11 // pred_fallthru
        _
    $region12: #{_lambda_.6} parent=5 // pred_fallthru
      _
    %p172 = scmp.lt.s32.totalorder %s11, 2
    // Predicated region
    $region17: #{_lambda_.6} parent=5 // pred_check
      %p173 = pneg %p172
    $region18: #{_lambda_.6} parent=5 // pred_check_branch
      %175 = sbr.rel (%p173) target = $region20
    $region19: #{_lambda_.6} parent=5 // pred_region
      // Predicated region
      $region21: #{_lambda_.6} parent=19 // pred_check
        %p176 = pneg %p45
      $region22: #{_lambda_.6} parent=19 // pred_check_branch
        %178 = sbr.rel (%p176) target = $region24
      $region23: #{_lambda_.6} parent=19 // pred_region
        %s179 = smul.u32 2, %s19
        %p180 = scmp.lt.s32.totalorder %s18, 1
        %s181 = scalar_select %p180, %s18, 1
        %p182 = scmp.lt.s32.totalorder %s179, 1
        %s183 = scalar_select %p182, %s179, 1
        %s184 = smul.addr %s181, 2
        %s185 = sadd.s32 %s183, %s184
        %s186 = smul.addr %s185, 8
        %s187 = scalar_lea.vmem %s0, %s186
        %s188 = smul.u32 2, %s19
      $region24: #{_lambda_.6} parent=19 // pred_fallthru
        _
      // Predicated region
      $region25: #{_lambda_.6} parent=19 // pred_check
        %p189 = pneg %p71
      $region26: #{_lambda_.6} parent=19 // pred_check_branch
        %191 = sbr.rel (%p189) target = $region28
      $region27: #{_lambda_.6} parent=19 // pred_region
        %p192 = scmp.lt.s32.totalorder %s18, 1
        %s193 = scalar_select %p192, %s18, 1
        %s194 = smul.addr %s193, 8
        %s195 = scalar_lea.vmem %s1, %s194
      $region28: #{_lambda_.6} parent=19 // pred_fallthru
        _
    $region20: #{_lambda_.6} parent=5 // pred_fallthru
      _
    %p196 = scmp.le.s32.totalorder 1, %s11
    %p197 = scmp.lt.s32.totalorder %s11, 3
    %p198 = pnand %p196, %p197
    %p199 = pneg %p198
    // Predicated region
    $region29: #{_lambda_.6} parent=5 // pred_check
      _
    $region30: #{_lambda_.6} parent=5 // pred_check_branch
      %201 = sbr.rel (%p198) target = $region32
    $region31: #{_lambda_.6} parent=5 // pred_region
      %s202 = ssub.s32 %s11, 1
      %s203 = smul.u32 2, %s21
      %p204 = scmp.lt.s32.totalorder %s20, 1
      %s205 = scalar_select %p204, %s20, 1
      %p206 = scmp.lt.s32.totalorder %s203, 1
      %s207 = scalar_select %p206, %s203, 1
      %s208 = smul.addr %s205, 2
      %s209 = sadd.s32 %s207, %s208
      %s210 = smul.addr %s209, 8
      %s211 = scalar_lea.vmem %s0, %s210
      %p212 = pneg %p51
      %p213 = pneg %p48
      %p214 = scmp.lt.s32.totalorder %s20, 1
      %s215 = scalar_select %p214, %s20, 1
      %s216 = smul.addr %s215, 8
      %s217 = scalar_lea.vmem %s1, %s216
      %p218 = pneg %p77
      %p219 = pneg %p74
      %p220 = pneg %p98
      %p221 = pneg %p95
      %p222 = pneg %p126
      %p223 = pneg %p123
      %s224 = smul.u32 2, %s21
      %p225 = scmp.lt.s32.totalorder %s20, 1
      %s226 = scalar_select %p225, %s20, 1
      %p227 = scmp.lt.s32.totalorder %s224, 1
      %s228 = scalar_select %p227, %s224, 1
      %s229 = smul.addr %s226, 2
      %s230 = sadd.s32 %s228, %s229
      %s231 = smul.addr %s230, 4
      %s232 = scalar_lea.vmem %s3, %s231
      %p233 = pneg %p154
      %p234 = pneg %p151
      %p235 = scmp.lt.s32.totalorder %s20, 1
      %s236 = scalar_select %p235, %s20, 1
      %p237 = scmp.lt.s32.totalorder %s21, 0
      %s238 = scalar_select %p237, %s21, 0
      %s239 = sadd.s32 %s238, %s236
      %s240 = smul.addr %s239, 4
      %s241 = scalar_lea.vmem %s4, %s240
      %s242 = smul.u32 2, %s21
      %p243 = scmp.lt.s32.totalorder %s20, 1
      %s244 = scalar_select %p243, %s20, 1
      %p245 = scmp.lt.s32.totalorder %s242, 1
      %s246 = scalar_select %p245, %s242, 1
      %s247 = smul.addr %s244, 2
      %s248 = sadd.s32 %s246, %s247
      %s249 = smul.addr %s248, 8
      %s250 = scalar_lea.vmem %s0, %s249
      %s251 = smul.u32 2, %s21
      %p252 = scmp.lt.s32.totalorder %s20, 1
      %s253 = scalar_select %p252, %s20, 1
      %s254 = smul.addr %s253, 8
      %s255 = scalar_lea.vmem %s1, %s254
      %s256 = smul.u32 2, %s21
      %p257 = scmp.lt.s32.totalorder %s20, 1
      %s258 = scalar_select %p257, %s20, 1
      %p259 = scmp.lt.s32.totalorder %s256, 1
      %s260 = scalar_select %p259, %s256, 1
      %s261 = smul.addr %s258, 2
      %s262 = sadd.s32 %s260, %s261
      %s263 = smul.addr %s262, 4
      %s264 = scalar_lea.vmem %s3, %s263
      %s265 = smul.u32 2, %s21
      %p266 = scmp.lt.s32.totalorder %s20, 1
      %s267 = scalar_select %p266, %s20, 1
      %p268 = scmp.lt.s32.totalorder %s21, 0
      %s269 = scalar_select %p268, %s21, 0
      %s270 = sadd.s32 %s269, %s267
      %s271 = smul.addr %s270, 4
      %s272 = scalar_lea.vmem %s4, %s271
      %v273 = vld [vmem:[%s255] sm:$0xff]
      %v274 = vld [vmem:[%s250] sm:$0xff]
      %v275 = vld [vmem:[%s250 + $0x8] sm:$0xff]
      %277 = vset.pattern.permute.xlu0 0
      %278 = vperm.xlu0 %277, %v273
      %v279 = vpop.permute.xlu0 %278
      %v281 = vmul.f32 %v274, %v279
      %v282 = vmul.f32 %v275, %v279
      %283 = vset.pattern.permute.xlu0 1
      %284 = vperm.xlu0 %283, %v273
      %v285 = vpop.permute.xlu0 %284
      %v287 = vadd.f32 %v281, %v285
      %v288 = vadd.f32 %v282, %v285
      %v289 = vmul.f32 %v287, 0.2
      %v290 = vmul.f32 %v288, 0.2
      %v291 = vmax.f32 %v287, %v289
      %v292 = vmax.f32 %v288, %v290
      %v293 = vld [vmem:[%s2] sm:$0xf]
      %vm294 = vcmask 64512
      %v296 = vsel %vm294, %v293, 0
      %298 = vmatprep.subr.mxu0 %v292
      %299 = vmatpush1.msra.mxu0 %v291
      %300 = vmatprep.subr.mxu0 0.0
      %301 = vmatpush1.msra.mxu0 0.0
      %302 = vmatprep.subr.mxu0 0.0
      %303 = vmatpush1.msra.mxu0 0.0
      %304 = vmatprep.subr.mxu0 0.0
      %305 = vmatpush1.msra.mxu0 0.0
      %306 = vmatprep.subr.mxu0 0.0
      %307 = vmatpush1.msra.mxu0 0.0
      %308 = vmatprep.subr.mxu0 0.0
      %309 = vmatpush1.msra.mxu0 0.0
      %310 = vmatprep.subr.mxu0 0.0
      %311 = vmatpush1.msra.mxu0 0.0
      %312 = vmatprep.subr.mxu0 0.0
      %313 = vmatpush1.msra.mxu0 0.0
      %314 = vmatprep.subr.mxu0 0.0
      %315 = vmatpush1.msra.mxu0 0.0
      %316 = vmatprep.subr.mxu0 0.0
      %317 = vmatpush1.msra.mxu0 0.0
      %318 = vmatprep.subr.mxu0 0.0
      %319 = vmatpush1.msra.mxu0 0.0
      %320 = vmatprep.subr.mxu0 0.0
      %321 = vmatpush1.msra.mxu0 0.0
      %322 = vmatprep.subr.mxu0 0.0
      %323 = vmatpush1.msra.mxu0 0.0
      %324 = vmatprep.subr.mxu0 0.0
      %325 = vmatpush1.msra.mxu0 0.0
      %326 = vmatprep.subr.mxu0 0.0
      %327 = vmatpush1.msra.mxu0 0.0
      %328 = vmatprep.subr.mxu0 0.0
      %329 = vmatpush1.msra.mxu0 0.0
      %330 = vmatprep.subr.mxu0 0.0
      %331 = vmatpush1.msra.mxu0 0.0
      %332 = vmatprep.subr.mxu0 0.0
      %333 = vmatpush1.msra.mxu0 0.0
      %334 = vmatprep.subr.mxu0 0.0
      %335 = vmatpush1.msra.mxu0 0.0
      %336 = vmatprep.subr.mxu0 0.0
      %337 = vmatpush1.msra.mxu0 0.0
      %338 = vmatprep.subr.mxu0 0.0
      %339 = vmatpush1.msra.mxu0 0.0
      %340 = vmatprep.subr.mxu0 0.0
      %341 = vmatpush1.msra.mxu0 0.0
      %342 = vmatprep.subr.mxu0 0.0
      %343 = vmatpush1.msra.mxu0 0.0
      %344 = vmatprep.subr.mxu0 0.0
      %345 = vmatpush1.msra.mxu0 0.0
      %346 = vmatprep.subr.mxu0 0.0
      %347 = vmatpush1.msra.mxu0 0.0
      %348 = vmatprep.subr.mxu0 0.0
      %349 = vmatpush1.msra.mxu0 0.0
      %350 = vmatprep.subr.mxu0 0.0
      %351 = vmatpush1.msra.mxu0 0.0
      %352 = vmatprep.subr.mxu0 0.0
      %353 = vmatpush1.msra.mxu0 0.0
      %354 = vmatprep.subr.mxu0 0.0
      %355 = vmatpush1.msra.mxu0 0.0
      %356 = vmatprep.subr.mxu0 0.0
      %357 = vmatpush1.msra.mxu0 0.0
      %358 = vmatprep.subr.mxu0 0.0
      %359 = vmatpush1.msra.mxu0 0.0
      %360 = vmatprep.subr.mxu0 0.0
      %361 = vmatpush1.msra.mxu0 0.0
      %362 = vmatprep.mubr.f32.mxu0 0.0
      %363 = vmatmul.mubr.f32.gmra.mrb[0].mxu0 %v296
      %v364 = vpop.f32.mrb[0].mxu0
      %v365 = vadd.f32 0.0, %v364
      %v366 = vpop.f32.mrb[0].mxu0
      %v367 = vadd.f32 0.0, %v366
      %368 = vdwg.mxu0
      %v371 = vcombine.low %v365, %v367
      %373 = vst [vmem:[%s264] sm:$0xff] %v371
      %vm374 = vcmask 1043456
      %v375 = vsel %vm374, %v365, 0.0
      %v376 = vsel %vm374, %v367, 0.0
      %v377 = vadd.f32 %v375, %v376
      %378 = vadd.xlane.f32.xlu0 %v377
      %v379 = vpop.xlane.xlu0 %378
      %vm380 = vcmask 3072
      %381 = vst.msk [vmem:[%s272] sm:$0xf] %vm380, %v379
      %v382 = vmul.f32 %v365, %v365
      %v383 = vmul.f32 %v367, %v367
      %v384 = vsel %vm374, %v382, 0.0
      %v385 = vsel %vm374, %v383, 0.0
      %v386 = vadd.f32 %v384, %v385
      %387 = vadd.xlane.f32.xlu0 %v386
      %v388 = vpop.xlane.xlu0 %387
      %vm389 = vcmask 11272
      %390 = vst.msk [vmem:[%s272] sm:$0xf] %vm389, %v388
      %s391 = smul.u32 2, %s21
      %p392 = scmp.lt.s32.totalorder %s20, 1
      %s393 = scalar_select %p392, %s20, 1
      %p394 = scmp.lt.s32.totalorder %s391, 1
      %s395 = scalar_select %p394, %s391, 1
      %s396 = smul.addr %s393, 2
      %s397 = sadd.s32 %s395, %s396
      %s398 = smul.addr %s397, 4
      %s399 = scalar_lea.vmem %s3, %s398
      %p400 = scmp.lt.s32.totalorder %s20, 1
      %s401 = scalar_select %p400, %s20, 1
      %p402 = scmp.lt.s32.totalorder %s21, 0
      %s403 = scalar_select %p402, %s21, 0
      %s404 = sadd.s32 %s403, %s401
      %s405 = smul.addr %s404, 4
      %s406 = scalar_lea.vmem %s4, %s405
      // Predicated region
      $region33: #{_lambda_.6} parent=31 // pred_check
        %p407 = pneg %p123
      $region34: #{_lambda_.6} parent=31 // pred_check_branch
        %409 = sbr.rel (%p407) target = $region36
      $region35: #{_lambda_.6} parent=31 // pred_region
        %s410 = smul.u32 2, %s21
      $region36: #{_lambda_.6} parent=31 // pred_fallthru
        _
      // Predicated region
      $region37: #{_lambda_.6} parent=31 // pred_check
        %p411 = pneg %p151
      $region38: #{_lambda_.6} parent=31 // pred_check_branch
        %413 = sbr.rel (%p411) target = $region40
      $region39: #{_lambda_.6} parent=31 // pred_region
        _
      $region40: #{_lambda_.6} parent=31 // pred_fallthru
        _
    $region32: #{_lambda_.6} parent=5 // pred_fallthru
      _
    %p414 = scmp.le.s32.totalorder 2, %s11
    // Predicated region
    $region41: #{_lambda_.6} parent=5 // pred_check
      %p415 = pneg %p414
    $region42: #{_lambda_.6} parent=5 // pred_check_branch
      %417 = sbr.rel (%p415) target = $region44
    $region43: #{_lambda_.6} parent=5 // pred_region
      %s418 = ssub.s32 %s11, 2
      // Predicated region
      $region45: #{_lambda_.6} parent=43 // pred_check
        %p419 = pneg %p129
      $region46: #{_lambda_.6} parent=43 // pred_check_branch
        %421 = sbr.rel (%p419) target = $region48
      $region47: #{_lambda_.6} parent=43 // pred_region
        %s422 = smul.u32 2, %s23
        %p423 = scmp.lt.s32.totalorder %s22, 1
        %s424 = scalar_select %p423, %s22, 1
        %p425 = scmp.lt.s32.totalorder %s422, 1
        %s426 = scalar_select %p425, %s422, 1
        %s427 = smul.addr %s424, 2
        %s428 = sadd.s32 %s426, %s427
        %s429 = smul.addr %s428, 4
        %s430 = scalar_lea.vmem %s3, %s429
      $region48: #{_lambda_.6} parent=43 // pred_fallthru
        _
      // Predicated region
      $region49: #{_lambda_.6} parent=43 // pred_check
        %p431 = pneg %p157
      $region50: #{_lambda_.6} parent=43 // pred_check_branch
        %433 = sbr.rel (%p431) target = $region52
      $region51: #{_lambda_.6} parent=43 // pred_region
        %p434 = scmp.lt.s32.totalorder %s22, 1
        %s435 = scalar_select %p434, %s22, 1
        %p436 = scmp.lt.s32.totalorder %s23, 0
        %s437 = scalar_select %p436, %s23, 0
        %s438 = sadd.s32 %s437, %s435
        %s439 = smul.addr %s438, 4
        %s440 = scalar_lea.vmem %s4, %s439
      $region52: #{_lambda_.6} parent=43 // pred_fallthru
        _
    $region44: #{_lambda_.6} parent=5 // pred_fallthru
      _
  $region6: #{_lambda_.6} parent=0 // loop_footer
    %s15 = sadd.s32 1, %s11
  $region7: #{_lambda_.6} parent=0 // loop_footer_branch
    %10 = sbr.rel target = $region3
  $region8: #{_lambda_.6} parent=0 // loop_exit
    _

// kernel: _lambda_.4
$region0: #{_lambda_.4}
  #allocation0 [shape = 'u32[]', space=smem, size = 0x4, offset = 0x4, fixed_abs, tag = 'smem constant byte address 0x4 - core index']
  #allocation1 [shape = 'u32[144,128]{1,0:T(1,128)}', space=vmem, size = 0x12000, scoped, tag = 'internal scratch']
  %s0 = inlined_call_operand.vmem [shape: f32[2,4,256], index: 0, kind: input, shape index: {}]
  %s1 = inlined_call_operand.vmem [shape: f32[8,4], index: 1, kind: input, shape index: {}]
  %s2 = inlined_call_operand.vmem [shape: f32[2,1,8,2], index: 2, kind: output, shape index: {}]
  %s3 = sld [smem:[#allocation0]]
  $region41: #{_lambda_.4} parent=0
    _
  %s5 = ssub.s32 1, %s3
  %s6 = scalar_select 0, %s5, %s3
  loop: start=0, step=1, limit=4
  $region2: #{_lambda_.4} parent=0 // loop_pre_header
    _
  $region3: #{_lambda_.4} parent=0 // loop_header
    %s8 = sphi 0, %s12
    %p9 = scmp.ge.s32.totalorder %s8, 4
    %s15 = sphi 0, %s27
    %s16 = sphi 0, %s23
    %s17 = sphi 0, %s15
    %s18 = sphi 0, %s16
    %s19 = sphi 0, %s17
    %s20 = sphi 0, %s18
    %s32 = sphi 0, %s34
    %s35 = sphi 0, %s32
    %s36 = sphi 0, %s35
    %s52 = sphi 0, %s36
    %s56 = sphi 0, %s56
    %s58 = sphi 0, %s56
    %s59 = sphi 0, %s58
    %s73 = sphi 0, %s59
    %s81 = sphi 0, %s83
    %s84 = sphi 0, %s81
    %s85 = sphi 0, %s84
    %s101 = sphi 0, %s85
  $region4: #{_lambda_.4} parent=0 // loop_header_branch
    %11 = sbr.rel (%p9) target = $region8
  $region5: #{_lambda_.4} parent=0 // loop_body
    %s13 = ssub.s32 %s8, 1
    %s14 = ssub.s32 %s8, 2
    %s21 = sadd.s32 1, %s16
    %p22 = scmp.ge.s32.totalorder %s21, 1
    %s23 = scalar_select %p22, 0, %s21
    %s24 = sadd.s32 1, %s15
    %s25 = scalar_select %p22, %s24, %s15
    %p26 = scmp.ge.s32.totalorder %s25, 2
    %s27 = scalar_select %p26, 0, %s25
    %s28 = ssub.s32 %s15, %s27
    %s29 = ssub.s32 %s16, %s23
    %s30 = sor.u32 %s28, %s29
    %p31 = scmp.eq.s32.totalorder %s30, 0
    %s33 = sadd.s32 %s32, 1
    %s34 = scalar_select %p31, %s32, %s33
    %p37 = pneg %p31
    %p38 = scmp.eq.s32.totalorder %s8, 1
    %p39 = por %p37, %p38
    %p40 = scmp.ne.s32.totalorder %s32, %s35
    %p41 = scmp.eq.s32.totalorder %s8, 0
    %p42 = por %p40, %p41
    %p43 = scmp.ne.s32.totalorder %s32, %s35
    %p44 = scmp.eq.s32.totalorder %s13, 1
    %p45 = por %p43, %p44
    %p46 = scmp.ne.s32.totalorder %s35, %s36
    %p47 = scmp.eq.s32.totalorder %s13, 0
    %p48 = por %p46, %p47
    %p49 = scmp.ne.s32.totalorder %s35, %s36
    %p50 = scmp.eq.s32.totalorder %s14, 1
    %p51 = por %p49, %p50
    %p53 = scmp.ne.s32.totalorder %s36, %s52
    %p54 = scmp.eq.s32.totalorder %s14, 0
    %p55 = por %p53, %p54
    %s57 = sadd.s32 %s56, 1
    %p60 = scmp.eq.s32.totalorder %s8, 1
    %p61 = scmp.ne.s32.totalorder %s56, %s58
    %p62 = scmp.eq.s32.totalorder %s8, 0
    %p63 = por %p61, %p62
    %p64 = scmp.ne.s32.totalorder %s56, %s58
    %p65 = scmp.eq.s32.totalorder %s13, 1
    %p66 = por %p64, %p65
    %p67 = scmp.ne.s32.totalorder %s58, %s59
    %p68 = scmp.eq.s32.totalorder %s13, 0
    %p69 = por %p67, %p68
    %p70 = scmp.ne.s32.totalorder %s58, %s59
    %p71 = scmp.eq.s32.totalorder %s14, 1
    %p72 = por %p70, %p71
    %p74 = scmp.ne.s32.totalorder %s59, %s73
    %p75 = scmp.eq.s32.totalorder %s14, 0
    %p76 = por %p74, %p75
    %s77 = ssub.s32 %s15, %s27
    %s78 = ssub.s32 %s16, %s23
    %s79 = sor.u32 %s77, %s78
    %p80 = scmp.eq.s32.totalorder %s79, 0
    %s82 = sadd.s32 %s81, 1
    %s83 = scalar_select %p80, %s81, %s82
    %p86 = pneg %p80
    %p87 = scmp.eq.s32.totalorder %s8, 1
    %p88 = por %p86, %p87
    %p89 = scmp.ne.s32.totalorder %s81, %s84
    %p90 = scmp.eq.s32.totalorder %s8, 0
    %p91 = por %p89, %p90
    %p92 = scmp.ne.s32.totalorder %s81, %s84
    %p93 = scmp.eq.s32.totalorder %s13, 1
    %p94 = por %p92, %p93
    %p95 = scmp.ne.s32.totalorder %s84, %s85
    %p96 = scmp.eq.s32.totalorder %s13, 0
    %p97 = por %p95, %p96
    %p98 = scmp.ne.s32.totalorder %s84, %s85
    %p99 = scmp.eq.s32.totalorder %s14, 1
    %p100 = por %p98, %p99
    %p102 = scmp.ne.s32.totalorder %s85, %s101
    %p103 = scmp.eq.s32.totalorder %s14, 0
    %p104 = por %p102, %p103
    %p105 = scmp.le.s32.totalorder 1, %s8
    %p106 = scmp.lt.s32.totalorder %s8, 3
    %p107 = pnand %p105, %p106
    %p108 = pneg %p107
    // Predicated region
    $region9: #{_lambda_.4} parent=5 // pred_check
      _
    $region10: #{_lambda_.4} parent=5 // pred_check_branch
      %110 = sbr.rel (%p107) target = $region12
    $region11: #{_lambda_.4} parent=5 // pred_region
      %s111 = ssub.s32 %s8, 1
      // Predicated region
      $region13: #{_lambda_.4} parent=11 // pred_check
        %p112 = pneg %p69
      $region14: #{_lambda_.4} parent=11 // pred_check_branch
        %114 = sbr.rel (%p112) target = $region16
      $region15: #{_lambda_.4} parent=11 // pred_region
        _
      $region16: #{_lambda_.4} parent=11 // pred_fallthru
        _
    $region12: #{_lambda_.4} parent=5 // pred_fallthru
      _
    %p115 = scmp.lt.s32.totalorder %s8, 2
    // Predicated region
    $region17: #{_lambda_.4} parent=5 // pred_check
      %p116 = pneg %p115
    $region18: #{_lambda_.4} parent=5 // pred_check_branch
      %118 = sbr.rel (%p116) target = $region20
    $region19: #{_lambda_.4} parent=5 // pred_region
      // Predicated region
      $region21: #{_lambda_.4} parent=19 // pred_check
        %p119 = pneg %p42
      $region22: #{_lambda_.4} parent=19 // pred_check_branch
        %121 = sbr.rel (%p119) target = $region24
      $region23: #{_lambda_.4} parent=19 // pred_region
        %s122 = smul.u32 2, %s16
        %p123 = scmp.lt.s32.totalorder %s15, 1
        %s124 = scalar_select %p123, %s15, 1
        %p125 = scmp.lt.s32.totalorder %s122, 1
        %s126 = scalar_select %p125, %s122, 1
        %s127 = smul.addr %s124, 2
        %s128 = sadd.s32 %s126, %s127
        %s129 = smul.addr %s128, 4
        %s130 = scalar_lea.vmem %s0, %s129
        %s131 = smul.u32 2, %s16
      $region24: #{_lambda_.4} parent=19 // pred_fallthru
        _
    $region20: #{_lambda_.4} parent=5 // pred_fallthru
      _
    %p132 = scmp.le.s32.totalorder 1, %s8
    %p133 = scmp.lt.s32.totalorder %s8, 3
    %p134 = pnand %p132, %p133
    %p135 = pneg %p134
    // Predicated region
    $region25: #{_lambda_.4} parent=5 // pred_check
      _
    $region26: #{_lambda_.4} parent=5 // pred_check_branch
      %137 = sbr.rel (%p134) target = $region28
    $region27: #{_lambda_.4} parent=5 // pred_region
      %s138 = ssub.s32 %s8, 1
      %s139 = smul.u32 2, %s18
      %p140 = scmp.lt.s32.totalorder %s17, 1
      %s141 = scalar_select %p140, %s17, 1
      %p142 = scmp.lt.s32.totalorder %s139, 1
      %s143 = scalar_select %p142, %s139, 1
      %s144 = smul.addr %s141, 2
      %s145 = sadd.s32 %s143, %s144
      %s146 = smul.addr %s145, 4
      %s147 = scalar_lea.vmem %s0, %s146
      %p148 = pneg %p48
      %p149 = pneg %p45
      %p150 = pneg %p69
      %p151 = pneg %p66
      %p152 = pneg %p97
      %p153 = pneg %p94
      %p154 = scmp.lt.s32.totalorder %s17, 1
      %s155 = scalar_select %p154, %s17, 1
      %p156 = scmp.lt.s32.totalorder %s18, 0
      %s157 = scalar_select %p156, %s18, 0
      %s158 = sadd.s32 %s157, %s155
      %s159 = smul.addr %s158, 8
      %s160 = scalar_lea.vmem %s2, %s159
      %s161 = smul.u32 2, %s18
      %p162 = scmp.lt.s32.totalorder %s17, 1
      %s163 = scalar_select %p162, %s17, 1
      %p164 = scmp.lt.s32.totalorder %s161, 1
      %s165 = scalar_select %p164, %s161, 1
      %s166 = smul.addr %s163, 2
      %s167 = sadd.s32 %s165, %s166
      %s168 = smul.addr %s167, 4
      %s169 = scalar_lea.vmem %s0, %s168
      %s170 = smul.u32 2, %s18
      %p171 = scmp.lt.s32.totalorder %s17, 1
      %s172 = scalar_select %p171, %s17, 1
      %p173 = scmp.lt.s32.totalorder %s18, 0
      %s174 = scalar_select %p173, %s18, 0
      %s175 = sadd.s32 %s174, %s172
      %s176 = smul.addr %s175, 8
      %s177 = scalar_lea.vmem %s2, %s176
      %v178 = vld [vmem:[%s169] sm:$0xff]
      %v179 = vld [vmem:[%s1] sm:$0xff]
      %v181 = vcombine.high %v178, %v178
      %vm182 = vcmask 31744
      %v184 = vsel %vm182, %v179, 0
      %vm186 = vcmask 1043456
      %v187 = vsel %vm186, %v178, 0
      %v189 = vsel %vm186, %v181, 0
      %191 = vmatprep.subr.mxu0 %v189
      %192 = vmatpush1.msra.mxu0 %v187
      %193 = vmatprep.subr.mxu0 0.0
      %194 = vmatpush1.msra.mxu0 0.0
      %195 = vmatprep.subr.mxu0 0.0
      %196 = vmatpush1.msra.mxu0 0.0
      %197 = vmatprep.subr.mxu0 0.0
      %198 = vmatpush1.msra.mxu0 0.0
      %199 = vmatprep.subr.mxu0 0.0
      %200 = vmatpush1.msra.mxu0 0.0
      %201 = vmatprep.subr.mxu0 0.0
      %202 = vmatpush1.msra.mxu0 0.0
      %203 = vmatprep.subr.mxu0 0.0
      %204 = vmatpush1.msra.mxu0 0.0
      %205 = vmatprep.subr.mxu0 0.0
      %206 = vmatpush1.msra.mxu0 0.0
      %207 = vmatprep.subr.mxu0 0.0
      %208 = vmatpush1.msra.mxu0 0.0
      %209 = vmatprep.subr.mxu0 0.0
      %210 = vmatpush1.msra.mxu0 0.0
      %211 = vmatprep.subr.mxu0 0.0
      %212 = vmatpush1.msra.mxu0 0.0
      %213 = vmatprep.subr.mxu0 0.0
      %214 = vmatpush1.msra.mxu0 0.0
      %215 = vmatprep.subr.mxu0 0.0
      %216 = vmatpush1.msra.mxu0 0.0
      %217 = vmatprep.subr.mxu0 0.0
      %218 = vmatpush1.msra.mxu0 0.0
      %219 = vmatprep.subr.mxu0 0.0
      %220 = vmatpush1.msra.mxu0 0.0
      %221 = vmatprep.subr.mxu0 0.0
      %222 = vmatpush1.msra.mxu0 0.0
      %223 = vmatprep.subr.mxu0 0.0
      %224 = vmatpush1.msra.mxu0 0.0
      %225 = vmatprep.subr.mxu0 0.0
      %226 = vmatpush1.msra.mxu0 0.0
      %227 = vmatprep.subr.mxu0 0.0
      %228 = vmatpush1.msra.mxu0 0.0
      %229 = vmatprep.subr.mxu0 0.0
      %230 = vmatpush1.msra.mxu0 0.0
      %231 = vmatprep.subr.mxu0 0.0
      %232 = vmatpush1.msra.mxu0 0.0
      %233 = vmatprep.subr.mxu0 0.0
      %234 = vmatpush1.msra.mxu0 0.0
      %235 = vmatprep.subr.mxu0 0.0
      %236 = vmatpush1.msra.mxu0 0.0
      %237 = vmatprep.subr.mxu0 0.0
      %238 = vmatpush1.msra.mxu0 0.0
      %239 = vmatprep.subr.mxu0 0.0
      %240 = vmatpush1.msra.mxu0 0.0
      %241 = vmatprep.subr.mxu0 0.0
      %242 = vmatpush1.msra.mxu0 0.0
      %243 = vmatprep.subr.mxu0 0.0
      %244 = vmatpush1.msra.mxu0 0.0
      %245 = vmatprep.subr.mxu0 0.0
      %246 = vmatpush1.msra.mxu0 0.0
      %247 = vmatprep.subr.mxu0 0.0
      %248 = vmatpush1.msra.mxu0 0.0
      %249 = vmatprep.subr.mxu0 0.0
      %250 = vmatpush1.msra.mxu0 0.0
      %251 = vmatprep.subr.mxu0 0.0
      %252 = vmatpush1.msra.mxu0 0.0
      %253 = vmatprep.subr.mxu0 0.0
      %254 = vmatpush1.msra.mxu0 0.0
      %255 = vmatprep.mubr.f32.mxu0 0.0
      %256 = vmatmul.mubr.f32.gmra.mrb[0].mxu0 %v184
      %v257 = vpop.f32.mrb[0].mxu0
      %v258 = vadd.f32 0.0, %v257
      %v259 = vpop.f32.mrb[0].mxu0
      %v260 = vadd.f32 0.0, %v259
      %261 = vdwg.mxu0
      %v262 = vadd.f32 %v258, %v260
      %263 = vadd.xlane.f32.xlu0 %v262
      %v264 = vpop.xlane.xlu0 %263
      %vm265 = vcmask 7168
      %266 = vst.msk [vmem:[%s177] sm:$0xff] %vm265, %v264
      %v267 = vmul.f32 %v258, %v258
      %v268 = vmul.f32 %v260, %v260
      %v269 = vadd.f32 %v267, %v268
      %270 = vadd.xlane.f32.xlu0 %v269
      %v271 = vpop.xlane.xlu0 %270
      %vm272 = vcmask 15368
      %273 = vst.msk [vmem:[%s177] sm:$0xff] %vm272, %v271
      %p274 = scmp.lt.s32.totalorder %s17, 1
      %s275 = scalar_select %p274, %s17, 1
      %p276 = scmp.lt.s32.totalorder %s18, 0
      %s277 = scalar_select %p276, %s18, 0
      %s278 = sadd.s32 %s277, %s275
      %s279 = smul.addr %s278, 8
      %s280 = scalar_lea.vmem %s2, %s279
      // Predicated region
      $region29: #{_lambda_.4} parent=27 // pred_check
        %p281 = pneg %p94
      $region30: #{_lambda_.4} parent=27 // pred_check_branch
        %283 = sbr.rel (%p281) target = $region32
      $region31: #{_lambda_.4} parent=27 // pred_region
        _
      $region32: #{_lambda_.4} parent=27 // pred_fallthru
        _
    $region28: #{_lambda_.4} parent=5 // pred_fallthru
      _
    %p284 = scmp.le.s32.totalorder 2, %s8
    // Predicated region
    $region33: #{_lambda_.4} parent=5 // pred_check
      %p285 = pneg %p284
    $region34: #{_lambda_.4} parent=5 // pred_check_branch
      %287 = sbr.rel (%p285) target = $region36
    $region35: #{_lambda_.4} parent=5 // pred_region
      %s288 = ssub.s32 %s8, 2
      // Predicated region
      $region37: #{_lambda_.4} parent=35 // pred_check
        %p289 = pneg %p100
      $region38: #{_lambda_.4} parent=35 // pred_check_branch
        %291 = sbr.rel (%p289) target = $region40
      $region39: #{_lambda_.4} parent=35 // pred_region
        %p292 = scmp.lt.s32.totalorder %s19, 1
        %s293 = scalar_select %p292, %s19, 1
        %p294 = scmp.lt.s32.totalorder %s20, 0
        %s295 = scalar_select %p294, %s20, 0
        %s296 = sadd.s32 %s295, %s293
        %s297 = smul.addr %s296, 8
        %s298 = scalar_lea.vmem %s2, %s297
      $region40: #{_lambda_.4} parent=35 // pred_fallthru
        _
    $region36: #{_lambda_.4} parent=5 // pred_fallthru
      _
  $region6: #{_lambda_.4} parent=0 // loop_footer
    %s12 = sadd.s32 1, %s8
  $region7: #{_lambda_.4} parent=0 // loop_footer_branch
    %7 = sbr.rel target = $region3
  $region8: #{_lambda_.4} parent=0 // loop_exit
    _

// kernel: _lambda_.5
$region0: #{_lambda_.5}
  #allocation0 [shape = 'u32[]', space=smem, size = 0x4, offset = 0x4, fixed_abs, tag = 'smem constant byte address 0x4 - core index']
  #allocation1 [shape = 'u32[144,128]{1,0:T(1,128)}', space=vmem, size = 0x12000, scoped, tag = 'internal scratch']
  %s0 = inlined_call_operand.vmem [shape: f32[2,1,4,288], index: 0, kind: input, shape index: {}]
  %s1 = inlined_call_operand.vmem [shape: f32[8,4], index: 1, kind: input, shape index: {}]
  %s2 = inlined_call_operand.vmem [shape: f32[2,8,2], index: 2, kind: input, shape index: {}]
  %s3 = inlined_call_operand.vmem [shape: f32[8,10], index: 3, kind: input, shape index: {}]
  %s4 = inlined_call_operand.vmem [shape: f32[2,8,256], index: 4, kind: output, shape index: {0}]
  %s5 = inlined_call_operand.vmem [shape: f32[2,1,8,2], index: 5, kind: output, shape index: {1}]
  %6 = xla_tuple %s4, %s5
  %s7 = sld [smem:[#allocation0]]
  $region57: #{_lambda_.5} parent=0
    _
  %s9 = ssub.s32 1, %s7
  %s10 = scalar_select 0, %s9, %s7
  loop: start=0, step=1, limit=4
  $region2: #{_lambda_.5} parent=0 // loop_pre_header
    _
  $region3: #{_lambda_.5} parent=0 // loop_header
    %s12 = sphi 0, %s16
    %p13 = scmp.ge.s32.totalorder %s12, 4
    %s19 = sphi 0, %s31
    %s20 = sphi 0, %s27
    %s21 = sphi 0, %s19
    %s22 = sphi 0, %s20
    %s23 = sphi 0, %s21
    %s24 = sphi 0, %s22
    %s36 = sphi 0, %s38
    %s39 = sphi 0, %s36
    %s40 = sphi 0, %s39
    %s56 = sphi 0, %s40
    %s60 = sphi 0, %s60
    %s62 = sphi 0, %s60
    %s63 = sphi 0, %s62
    %s77 = sphi 0, %s63
    %s83 = sphi 0, %s85
    %s86 = sphi 0, %s83
    %s87 = sphi 0, %s86
    %s103 = sphi 0, %s87
    %s107 = sphi 0, %s107
    %s109 = sphi 0, %s107
    %s110 = sphi 0, %s109
    %s124 = sphi 0, %s110
    %s132 = sphi 0, %s134
    %s135 = sphi 0, %s132
    %s136 = sphi 0, %s135
    %s152 = sphi 0, %s136
    %s160 = sphi 0, %s162
    %s163 = sphi 0, %s160
    %s164 = sphi 0, %s163
    %s180 = sphi 0, %s164
  $region4: #{_lambda_.5} parent=0 // loop_header_branch
    %15 = sbr.rel (%p13) target = $region8
  $region5: #{_lambda_.5} parent=0 // loop_body
    %s17 = ssub.s32 %s12, 1
    %s18 = ssub.s32 %s12, 2
    %s25 = sadd.s32 1, %s20
    %p26 = scmp.ge.s32.totalorder %s25, 1
    %s27 = scalar_select %p26, 0, %s25
    %s28 = sadd.s32 1, %s19
    %s29 = scalar_select %p26, %s28, %s19
    %p30 = scmp.ge.s32.totalorder %s29, 2
    %s31 = scalar_select %p30, 0, %s29
    %s32 = ssub.s32 %s19, %s31
    %s33 = ssub.s32 %s20, %s27
    %s34 = sor.u32 %s32, %s33
    %p35 = scmp.eq.s32.totalorder %s34, 0
    %s37 = sadd.s32 %s36, 1
    %s38 = scalar_select %p35, %s36, %s37
    %p41 = pneg %p35
    %p42 = scmp.eq.s32.totalorder %s12, 1
    %p43 = por %p41, %p42
    %p44 = scmp.ne.s32.totalorder %s36, %s39
    %p45 = scmp.eq.s32.totalorder %s12, 0
    %p46 = por %p44, %p45
    %p47 = scmp.ne.s32.totalorder %s36, %s39
    %p48 = scmp.eq.s32.totalorder %s17, 1
    %p49 = por %p47, %p48
    %p50 = scmp.ne.s32.totalorder %s39, %s40
    %p51 = scmp.eq.s32.totalorder %s17, 0
    %p52 = por %p50, %p51
    %p53 = scmp.ne.s32.totalorder %s39, %s40
    %p54 = scmp.eq.s32.totalorder %s18, 1
    %p55 = por %p53, %p54
    %p57 = scmp.ne.s32.totalorder %s40, %s56
    %p58 = scmp.eq.s32.totalorder %s18, 0
    %p59 = por %p57, %p58
    %s61 = sadd.s32 %s60, 1
    %p64 = scmp.eq.s32.totalorder %s12, 1
    %p65 = scmp.ne.s32.totalorder %s60, %s62
    %p66 = scmp.eq.s32.totalorder %s12, 0
    %p67 = por %p65, %p66
    %p68 = scmp.ne.s32.totalorder %s60, %s62
    %p69 = scmp.eq.s32.totalorder %s17, 1
    %p70 = por %p68, %p69
    %p71 = scmp.ne.s32.totalorder %s62, %s63
    %p72 = scmp.eq.s32.totalorder %s17, 0
    %p73 = por %p71, %p72
    %p74 = scmp.ne.s32.totalorder %s62, %s63
    %p75 = scmp.eq.s32.totalorder %s18, 1
    %p76 = por %p74, %p75
    %p78 = scmp.ne.s32.totalorder %s63, %s77
    %p79 = scmp.eq.s32.totalorder %s18, 0
    %p80 = por %p78, %p79
    %s81 = ssub.s32 %s19, %s31
    %p82 = scmp.eq.s32.totalorder %s81, 0
    %s84 = sadd.s32 %s83, 1
    %s85 = scalar_select %p82, %s83, %s84
    %p88 = pneg %p82
    %p89 = scmp.eq.s32.totalorder %s12, 1
    %p90 = por %p88, %p89
    %p91 = scmp.ne.s32.totalorder %s83, %s86
    %p92 = scmp.eq.s32.totalorder %s12, 0
    %p93 = por %p91, %p92
    %p94 = scmp.ne.s32.totalorder %s83, %s86
    %p95 = scmp.eq.s32.totalorder %s17, 1
    %p96 = por %p94, %p95
    %p97 = scmp.ne.s32.totalorder %s86, %s87
    %p98 = scmp.eq.s32.totalorder %s17, 0
    %p99 = por %p97, %p98
    %p100 = scmp.ne.s32.totalorder %s86, %s87
    %p101 = scmp.eq.s32.totalorder %s18, 1
    %p102 = por %p100, %p101
    %p104 = scmp.ne.s32.totalorder %s87, %s103
    %p105 = scmp.eq.s32.totalorder %s18, 0
    %p106 = por %p104, %p105
    %s108 = sadd.s32 %s107, 1
    %p111 = scmp.eq.s32.totalorder %s12, 1
    %p112 = scmp.ne.s32.totalorder %s107, %s109
    %p113 = scmp.eq.s32.totalorder %s12, 0
    %p114 = por %p112, %p113
    %p115 = scmp.ne.s32.totalorder %s107, %s109
    %p116 = scmp.eq.s32.totalorder %s17, 1
    %p117 = por %p115, %p116
    %p118 = scmp.ne.s32.totalorder %s109, %s110
    %p119 = scmp.eq.s32.totalorder %s17, 0
    %p120 = por %p118, %p119
    %p121 = scmp.ne.s32.totalorder %s109, %s110
    %p122 = scmp.eq.s32.totalorder %s18, 1
    %p123 = por %p121, %p122
    %p125 = scmp.ne.s32.totalorder %s110, %s124
    %p126 = scmp.eq.s32.totalorder %s18, 0
    %p127 = por %p125, %p126
    %s128 = ssub.s32 %s19, %s31
    %s129 = ssub.s32 %s20, %s27
    %s130 = sor.u32 %s128, %s129
    %p131 = scmp.eq.s32.totalorder %s130, 0
    %s133 = sadd.s32 %s132, 1
    %s134 = scalar_select %p131, %s132, %s133
    %p137 = pneg %p131
    %p138 = scmp.eq.s32.totalorder %s12, 1
    %p139 = por %p137, %p138
    %p140 = scmp.ne.s32.totalorder %s132, %s135
    %p141 = scmp.eq.s32.totalorder %s12, 0
    %p142 = por %p140, %p141
    %p143 = scmp.ne.s32.totalorder %s132, %s135
    %p144 = scmp.eq.s32.totalorder %s17, 1
    %p145 = por %p143, %p144
    %p146 = scmp.ne.s32.totalorder %s135, %s136
    %p147 = scmp.eq.s32.totalorder %s17, 0
    %p148 = por %p146, %p147
    %p149 = scmp.ne.s32.totalorder %s135, %s136
    %p150 = scmp.eq.s32.totalorder %s18, 1
    %p151 = por %p149, %p150
    %p153 = scmp.ne.s32.totalorder %s136, %s152
    %p154 = scmp.eq.s32.totalorder %s18, 0
    %p155 = por %p153, %p154
    %s156 = ssub.s32 %s19, %s31
    %s157 = ssub.s32 %s20, %s27
    %s158 = sor.u32 %s156, %s157
    %p159 = scmp.eq.s32.totalorder %s158, 0
    %s161 = sadd.s32 %s160, 1
    %s162 = scalar_select %p159, %s160, %s161
    %p165 = pneg %p159
    %p166 = scmp.eq.s32.totalorder %s12, 1
    %p167 = por %p165, %p166
    %p168 = scmp.ne.s32.totalorder %s160, %s163
    %p169 = scmp.eq.s32.totalorder %s12, 0
    %p170 = por %p168, %p169
    %p171 = scmp.ne.s32.totalorder %s160, %s163
    %p172 = scmp.eq.s32.totalorder %s17, 1
    %p173 = por %p171, %p172
    %p174 = scmp.ne.s32.totalorder %s163, %s164
    %p175 = scmp.eq.s32.totalorder %s17, 0
    %p176 = por %p174, %p175
    %p177 = scmp.ne.s32.totalorder %s163, %s164
    %p178 = scmp.eq.s32.totalorder %s18, 1
    %p179 = por %p177, %p178
    %p181 = scmp.ne.s32.totalorder %s164, %s180
    %p182 = scmp.eq.s32.totalorder %s18, 0
    %p183 = por %p181, %p182
    %p184 = scmp.le.s32.totalorder 1, %s12
    %p185 = scmp.lt.s32.totalorder %s12, 3
    %p186 = pnand %p184, %p185
    %p187 = pneg %p186
    // Predicated region
    $region9: #{_lambda_.5} parent=5 // pred_check
      _
    $region10: #{_lambda_.5} parent=5 // pred_check_branch
      %189 = sbr.rel (%p186) target = $region12
    $region11: #{_lambda_.5} parent=5 // pred_region
      %s190 = ssub.s32 %s12, 1
      // Predicated region
      $region13: #{_lambda_.5} parent=11 // pred_check
        %p191 = pneg %p73
      $region14: #{_lambda_.5} parent=11 // pred_check_branch
        %193 = sbr.rel (%p191) target = $region16
      $region15: #{_lambda_.5} parent=11 // pred_region
        _
      $region16: #{_lambda_.5} parent=11 // pred_fallthru
        _
      // Predicated region
      $region17: #{_lambda_.5} parent=11 // pred_check
        %p194 = pneg %p120
      $region18: #{_lambda_.5} parent=11 // pred_check_branch
        %196 = sbr.rel (%p194) target = $region20
      $region19: #{_lambda_.5} parent=11 // pred_region
        _
      $region20: #{_lambda_.5} parent=11 // pred_fallthru
        _
    $region12: #{_lambda_.5} parent=5 // pred_fallthru
      _
    %p197 = scmp.lt.s32.totalorder %s12, 2
    // Predicated region
    $region21: #{_lambda_.5} parent=5 // pred_check
      %p198 = pneg %p197
    $region22: #{_lambda_.5} parent=5 // pred_check_branch
      %200 = sbr.rel (%p198) target = $region24
    $region23: #{_lambda_.5} parent=5 // pred_region
      // Predicated region
      $region25: #{_lambda_.5} parent=23 // pred_check
        %p201 = pneg %p46
      $region26: #{_lambda_.5} parent=23 // pred_check_branch
        %203 = sbr.rel (%p201) target = $region28
      $region27: #{_lambda_.5} parent=23 // pred_region
        %p204 = scmp.lt.s32.totalorder %s19, 1
        %s205 = scalar_select %p204, %s19, 1
        %p206 = scmp.lt.s32.totalorder %s20, 0
        %s207 = scalar_select %p206, %s20, 0
        %s208 = smul.addr %s207, 3
        %s209 = smul.addr %s205, 3
        %s210 = sadd.s32 %s208, %s209
        %s211 = smul.addr %s210, 4
        %s212 = scalar_lea.vmem %s0, %s211
      $region28: #{_lambda_.5} parent=23 // pred_fallthru
        _
      // Predicated region
      $region29: #{_lambda_.5} parent=23 // pred_check
        %p213 = pneg %p93
      $region30: #{_lambda_.5} parent=23 // pred_check_branch
        %215 = sbr.rel (%p213) target = $region32
      $region31: #{_lambda_.5} parent=23 // pred_region
        %p216 = scmp.lt.s32.totalorder %s19, 1
        %s217 = scalar_select %p216, %s19, 1
        %s218 = smul.addr %s217, 8
        %s219 = scalar_lea.vmem %s2, %s218
      $region32: #{_lambda_.5} parent=23 // pred_fallthru
        _
    $region24: #{_lambda_.5} parent=5 // pred_fallthru
      _
    %p220 = scmp.le.s32.totalorder 1, %s12
    %p221 = scmp.lt.s32.totalorder %s12, 3
    %p222 = pnand %p220, %p221
    %p223 = pneg %p222
    // Predicated region
    $region33: #{_lambda_.5} parent=5 // pred_check
      _
    $region34: #{_lambda_.5} parent=5 // pred_check_branch
      %225 = sbr.rel (%p222) target = $region36
    $region35: #{_lambda_.5} parent=5 // pred_region
      %s226 = ssub.s32 %s12, 1
      %p227 = scmp.lt.s32.totalorder %s21, 1
      %s228 = scalar_select %p227, %s21, 1
      %p229 = scmp.lt.s32.totalorder %s22, 0
      %s230 = scalar_select %p229, %s22, 0
      %s231 = smul.addr %s230, 3
      %s232 = smul.addr %s228, 3
      %s233 = sadd.s32 %s231, %s232
      %s234 = smul.addr %s233, 4
      %s235 = scalar_lea.vmem %s0, %s234
      %p236 = pneg %p52
      %p237 = pneg %p49
      %p238 = pneg %p73
      %p239 = pneg %p70
      %p240 = scmp.lt.s32.totalorder %s21, 1
      %s241 = scalar_select %p240, %s21, 1
      %s242 = smul.addr %s241, 8
      %s243 = scalar_lea.vmem %s2, %s242
      %p244 = pneg %p99
      %p245 = pneg %p96
      %p246 = pneg %p120
      %p247 = pneg %p117
      %p248 = pneg %p148
      %p249 = pneg %p145
      %s250 = smul.u32 2, %s22
      %p251 = scmp.lt.s32.totalorder %s21, 1
      %s252 = scalar_select %p251, %s21, 1
      %p253 = scmp.lt.s32.totalorder %s250, 1
      %s254 = scalar_select %p253, %s250, 1
      %s255 = smul.addr %s252, 2
      %s256 = sadd.s32 %s254, %s255
      %s257 = smul.addr %s256, 8
      %s258 = scalar_lea.vmem %s4, %s257
      %p259 = pneg %p176
      %p260 = pneg %p173
      %p261 = scmp.lt.s32.totalorder %s21, 1
      %s262 = scalar_select %p261, %s21, 1
      %p263 = scmp.lt.s32.totalorder %s22, 0
      %s264 = scalar_select %p263, %s22, 0
      %s265 = sadd.s32 %s264, %s262
      %s266 = smul.addr %s265, 8
      %s267 = scalar_lea.vmem %s5, %s266
      %p268 = scmp.lt.s32.totalorder %s21, 1
      %s269 = scalar_select %p268, %s21, 1
      %p270 = scmp.lt.s32.totalorder %s22, 0
      %s271 = scalar_select %p270, %s22, 0
      %s272 = smul.addr %s271, 3
      %s273 = smul.addr %s269, 3
      %s274 = sadd.s32 %s272, %s273
      %s275 = smul.addr %s274, 4
      %s276 = scalar_lea.vmem %s0, %s275
      %p277 = scmp.lt.s32.totalorder %s21, 1
      %s278 = scalar_select %p277, %s21, 1
      %s279 = smul.addr %s278, 8
      %s280 = scalar_lea.vmem %s2, %s279
      %s281 = smul.u32 2, %s22
      %p282 = scmp.lt.s32.totalorder %s21, 1
      %s283 = scalar_select %p282, %s21, 1
      %p284 = scmp.lt.s32.totalorder %s281, 1
      %s285 = scalar_select %p284, %s281, 1
      %s286 = smul.addr %s283, 2
      %s287 = sadd.s32 %s285, %s286
      %s288 = smul.addr %s287, 8
      %s289 = scalar_lea.vmem %s4, %s288
      %s290 = smul.u32 2, %s22
      %p291 = scmp.lt.s32.totalorder %s21, 1
      %s292 = scalar_select %p291, %s21, 1
      %p293 = scmp.lt.s32.totalorder %s22, 0
      %s294 = scalar_select %p293, %s22, 0
      %s295 = sadd.s32 %s294, %s292
      %s296 = smul.addr %s295, 8
      %s297 = scalar_lea.vmem %s5, %s296
      %v298 = vld [vmem:[%s276] sm:$0xff]
      %v299 = vld [vmem:[%s276 + $0x8] sm:$0xf]
      %v300 = vld [vmem:[%s1] sm:$0xff]
      %v303 = vcombine.high %v298, %v298
      %vm304 = vcmask 31744
      %v306 = vsel %vm304, %v300, 0
      %vm308 = vcmask 1043456
      %v309 = vsel %vm308, %v298, 0
      %v311 = vsel %vm308, %v303, 0
      %v313 = vsel %vm308, %v299, 0
      %315 = vmatprep.subr.mxu0 %v311
      %316 = vmatpush1.msra.mxu0 %v309
      %317 = vmatprep.subr.mxu0 0.0
      %318 = vmatpush1.msra.mxu0 0.0
      %319 = vmatprep.subr.mxu0 0.0
      %320 = vmatpush1.msra.mxu0 0.0
      %321 = vmatprep.subr.mxu0 0.0
      %322 = vmatpush1.msra.mxu0 0.0
      %323 = vmatprep.subr.mxu0 0.0
      %324 = vmatpush1.msra.mxu0 0.0
      %325 = vmatprep.subr.mxu0 0.0
      %326 = vmatpush1.msra.mxu0 0.0
      %327 = vmatprep.subr.mxu0 0.0
      %328 = vmatpush1.msra.mxu0 0.0
      %329 = vmatprep.subr.mxu0 0.0
      %330 = vmatpush1.msra.mxu0 0.0
      %331 = vmatprep.subr.mxu0 0.0
      %332 = vmatpush1.msra.mxu0 0.0
      %333 = vmatprep.subr.mxu0 0.0
      %334 = vmatpush1.msra.mxu0 0.0
      %335 = vmatprep.subr.mxu0 0.0
      %336 = vmatpush1.msra.mxu0 0.0
      %337 = vmatprep.subr.mxu0 0.0
      %338 = vmatpush1.msra.mxu0 0.0
      %339 = vmatprep.subr.mxu0 0.0
      %340 = vmatpush1.msra.mxu0 0.0
      %341 = vmatprep.subr.mxu0 0.0
      %342 = vmatpush1.msra.mxu0 0.0
      %343 = vmatprep.subr.mxu0 0.0
      %344 = vmatpush1.msra.mxu0 0.0
      %345 = vmatprep.subr.mxu0 0.0
      %346 = vmatpush1.msra.mxu0 0.0
      %347 = vmatprep.subr.mxu0 0.0
      %348 = vmatpush1.msra.mxu0 0.0
      %349 = vmatprep.subr.mxu0 0.0
      %350 = vmatpush1.msra.mxu0 0.0
      %351 = vmatprep.subr.mxu0 0.0
      %352 = vmatpush1.msra.mxu0 0.0
      %353 = vmatprep.subr.mxu0 0.0
      %354 = vmatpush1.msra.mxu0 0.0
      %355 = vmatprep.subr.mxu0 0.0
      %356 = vmatpush1.msra.mxu0 0.0
      %357 = vmatprep.subr.mxu0 0.0
      %358 = vmatpush1.msra.mxu0 0.0
      %359 = vmatprep.subr.mxu0 0.0
      %360 = vmatpush1.msra.mxu0 0.0
      %361 = vmatprep.subr.mxu0 0.0
      %362 = vmatpush1.msra.mxu0 0.0
      %363 = vmatprep.subr.mxu0 0.0
      %364 = vmatpush1.msra.mxu0 0.0
      %365 = vmatprep.subr.mxu0 0.0
      %366 = vmatpush1.msra.mxu0 0.0
      %367 = vmatprep.subr.mxu0 0.0
      %368 = vmatpush1.msra.mxu0 0.0
      %369 = vmatprep.subr.mxu0 0.0
      %370 = vmatpush1.msra.mxu0 0.0
      %371 = vmatprep.subr.mxu0 0.0
      %372 = vmatpush1.msra.mxu0 0.0
      %373 = vmatprep.subr.mxu0 0.0
      %374 = vmatpush1.msra.mxu0 0.0
      %375 = vmatprep.subr.mxu0 0.0
      %376 = vmatpush1.msra.mxu0 0.0
      %377 = vmatprep.subr.mxu0 0.0
      %378 = vmatpush1.msra.mxu0 0.0
      %379 = vmatprep.mubr.f32.mxu0 0.0
      %380 = vmatmul.mubr.f32.gmra.mrb[0].mxu0 %v306
      %v381 = vpop.f32.mrb[0].mxu0
      %v382 = vadd.f32 0.0, %v381
      %v383 = vpop.f32.mrb[0].mxu0
      %v384 = vadd.f32 0.0, %v383
      %385 = vdwg.mxu0
      %386 = vmatprep.subr.mxu0 0.0
      %387 = vmatpush1.msra.mxu0 %v313
      %388 = vmatprep.subr.mxu0 0.0
      %389 = vmatpush1.msra.mxu0 0.0
      %390 = vmatprep.subr.mxu0 0.0
      %391 = vmatpush1.msra.mxu0 0.0
      %392 = vmatprep.subr.mxu0 0.0
      %393 = vmatpush1.msra.mxu0 0.0
      %394 = vmatprep.subr.mxu0 0.0
      %395 = vmatpush1.msra.mxu0 0.0
      %396 = vmatprep.subr.mxu0 0.0
      %397 = vmatpush1.msra.mxu0 0.0
      %398 = vmatprep.subr.mxu0 0.0
      %399 = vmatpush1.msra.mxu0 0.0
      %400 = vmatprep.subr.mxu0 0.0
      %401 = vmatpush1.msra.mxu0 0.0
      %402 = vmatprep.subr.mxu0 0.0
      %403 = vmatpush1.msra.mxu0 0.0
      %404 = vmatprep.subr.mxu0 0.0
      %405 = vmatpush1.msra.mxu0 0.0
      %406 = vmatprep.subr.mxu0 0.0
      %407 = vmatpush1.msra.mxu0 0.0
      %408 = vmatprep.subr.mxu0 0.0
      %409 = vmatpush1.msra.mxu0 0.0
      %410 = vmatprep.subr.mxu0 0.0
      %411 = vmatpush1.msra.mxu0 0.0
      %412 = vmatprep.subr.mxu0 0.0
      %413 = vmatpush1.msra.mxu0 0.0
      %414 = vmatprep.subr.mxu0 0.0
      %415 = vmatpush1.msra.mxu0 0.0
      %416 = vmatprep.subr.mxu0 0.0
      %417 = vmatpush1.msra.mxu0 0.0
      %418 = vmatprep.subr.mxu0 0.0
      %419 = vmatpush1.msra.mxu0 0.0
      %420 = vmatprep.subr.mxu0 0.0
      %421 = vmatpush1.msra.mxu0 0.0
      %422 = vmatprep.subr.mxu0 0.0
      %423 = vmatpush1.msra.mxu0 0.0
      %424 = vmatprep.subr.mxu0 0.0
      %425 = vmatpush1.msra.mxu0 0.0
      %426 = vmatprep.subr.mxu0 0.0
      %427 = vmatpush1.msra.mxu0 0.0
      %428 = vmatprep.subr.mxu0 0.0
      %429 = vmatpush1.msra.mxu0 0.0
      %430 = vmatprep.subr.mxu0 0.0
      %431 = vmatpush1.msra.mxu0 0.0
      %432 = vmatprep.subr.mxu0 0.0
      %433 = vmatpush1.msra.mxu0 0.0
      %434 = vmatprep.subr.mxu0 0.0
      %435 = vmatpush1.msra.mxu0 0.0
      %436 = vmatprep.subr.mxu0 0.0
      %437 = vmatpush1.msra.mxu0 0.0
      %438 = vmatprep.subr.mxu0 0.0
      %439 = vmatpush1.msra.mxu0 0.0
      %440 = vmatprep.subr.mxu0 0.0
      %441 = vmatpush1.msra.mxu0 0.0
      %442 = vmatprep.subr.mxu0 0.0
      %443 = vmatpush1.msra.mxu0 0.0
      %444 = vmatprep.subr.mxu0 0.0
      %445 = vmatpush1.msra.mxu0 0.0
      %446 = vmatprep.subr.mxu0 0.0
      %447 = vmatpush1.msra.mxu0 0.0
      %448 = vmatprep.subr.mxu0 0.0
      %449 = vmatpush1.msra.mxu0 0.0
      %450 = vmatprep.mubr.f32.mxu0 0.0
      %451 = vmatmul.mubr.f32.gmra.mrb[0].mxu0 %v306
      %v452 = vpop.f32.mrb[0].mxu0
      %v453 = vadd.f32 0.0, %v452
      %v454 = vpop.f32.mrb[0].mxu0
      %455 = vdwg.mxu0
      %v456 = vld [vmem:[%s280] sm:$0xff]
      %458 = vset.pattern.permute.xlu0 0
      %459 = vperm.xlu0 %458, %v456
      %v460 = vpop.permute.xlu0 %459
      %v462 = vmul.f32 %v382, %v460
      %v463 = vmul.f32 %v384, %v460
      %v464 = vmul.f32 %v453, %v460
      %465 = vset.pattern.permute.xlu0 1
      %466 = vperm.xlu0 %465, %v456
      %v467 = vpop.permute.xlu0 %466
      %v469 = vadd.f32 %v462, %v467
      %v470 = vadd.f32 %v463, %v467
      %v471 = vadd.f32 %v464, %v467
      %v472 = vmul.f32 %v469, 0.2
      %v473 = vmul.f32 %v470, 0.2
      %v474 = vmul.f32 %v471, 0.2
      %v475 = vmax.f32 %v469, %v472
      %v476 = vmax.f32 %v470, %v473
      %v477 = vmax.f32 %v471, %v474
      %v478 = vlaneseq
      %v479 = vand.u32 %v478, 127
      %v480 = vadd.s32 %v479, 128
      %vm481 = vcmp.lt.s32.totalorder %v479, 0
      %v482 = vsub.s32 0, %v479
      %v483 = vsel %vm481, %v482, %v479
      %v484 = vshrl.u32 %v483, 4
      %v485 = vand.u32 %v483, 15
      %v486 = vsub.s32 0, %v485
      %v487 = vsel %vm481, %v486, %v485
      %vm488 = vcmp.lt.s32.totalorder %v480, 0
      %v489 = vsub.s32 0, %v480
      %v490 = vsel %vm488, %v489, %v480
      %v491 = vshrl.u32 %v490, 4
      %v492 = vand.u32 %v490, 15
      %v493 = vsub.s32 0, %v492
      %v494 = vsel %vm488, %v493, %v492
      %vm495 = vcmp.ne.s32.totalorder %v487, 0
      %vm496 = vcmp.ne.s32.totalorder %v494, 0
      %vm497 = vcmp.lt.s32.totalorder %v487, 0
      %vm498 = vcmp.lt.s32.totalorder %v494, 0
      %vm499 = vmand %vm497, %vm495
      %vm500 = vmand %vm498, %vm496
      %v501 = vadd.s32 %v487, 16
      %v502 = vadd.s32 %v494, 16
      %v503 = vsel %vm499, %v501, %v487
      %v504 = vsel %vm500, %v502, %v494
      %vm505 = vcmp.eq.s32.totalorder %v503, 0
      %vm506 = vcmp.eq.s32.totalorder %v504, 0
      %vm507 = vcmp.eq.s32.totalorder %v503, 15
      %vm508 = vcmp.eq.s32.totalorder %v504, 15
      %v509 = vld [vmem:[%s3] sm:$0xff]
      %510 = vrot.lane.b32.xlu0 %v475, 1
      %v511 = vpop.permute.xlu0 %510
      %512 = vrot.lane.b32.xlu0 %v476, 1
      %v513 = vpop.permute.xlu0 %512
      %vm514 = vcmp.lt.s32.totalorder %v479, 1
      %v515 = vsel %vm514, %v511, %v513
      %v516 = vsel %vm514, %v513, %v511
      %517 = vrot.lane.b32.xlu0 %v475, 127
      %v518 = vpop.permute.xlu0 %517
      %519 = vrot.lane.b32.xlu0 %v476, 127
      %v520 = vpop.permute.xlu0 %519
      %vm521 = vcmp.lt.s32.totalorder %v479, 127
      %v522 = vsel %vm521, %v518, %v520
      %v523 = vsel %vm521, %v520, %v518
      %v524 = vsel %vm505, 1, 0
      %v525 = vsel %vm506, 1, 0
      %vm526 = vcmp.eq.s32.totalorder %v524, 1
      %vm527 = vcmp.eq.s32.totalorder %v525, 1
      %v528 = vsel %vm526, %v522, %v516
      %v529 = vsel %vm527, %v523, %v515
      %v530 = vsel %vm507, 1, 0
      %v531 = vsel %vm508, 1, 0
      %vm532 = vcmp.eq.s32.totalorder %v530, 1
      %vm533 = vcmp.eq.s32.totalorder %v531, 1
      %v534 = vsel %vm532, %v516, %v522
      %v535 = vsel %vm533, %v515, %v523
      %537 = vset.pattern.permute.xlu0 0
      %538 = vperm.xlu0 %537, %v509
      %v539 = vpop.permute.xlu0 %538
      %v541 = vmul.f32 %v528, %v539
      %v542 = vmul.f32 %v529, %v539
      %543 = vset.pattern.permute.xlu0 1
      %544 = vperm.xlu0 %543, %v509
      %v545 = vpop.permute.xlu0 %544
      %v547 = vmul.f32 %v475, %v545
      %v548 = vmul.f32 %v476, %v545
      %v549 = vadd.f32 %v541, %v547
      %v550 = vadd.f32 %v542, %v548
      %551 = vset.pattern.permute.xlu0 2
      %552 = vperm.xlu0 %551, %v509
      %v553 = vpop.permute.xlu0 %552
      %v555 = vmul.f32 %v534, %v553
      %v556 = vmul.f32 %v535, %v553
      %v557 = vadd.f32 %v549, %v555
      %v558 = vadd.f32 %v550, %v556
      %562 = vrot.lane.b32.xlu0 %v475, 112
      %v563 = vpop.permute.xlu0 %562
      %564 = vrot.lane.b32.xlu0 %v476, 112
      %v565 = vpop.permute.xlu0 %564
      %566 = vrot.lane.b32.xlu0 %v477, 112
      %v567 = vpop.permute.xlu0 %566
      %vm568 = vcmask 916480
      %v569 = vsel %vm568, %v563, %v565
      %v570 = vsel %vm568, %v565, %v567
      %573 = vrot.lane.b32.xlu0 %v569, 1
      %v574 = vpop.permute.xlu0 %573
      %575 = vrot.lane.b32.xlu0 %v570, 1
      %v576 = vpop.permute.xlu0 %575
      %v577 = vsel %vm514, %v574, %v576
      %v578 = vsel %vm514, %v576, %v574
      %579 = vrot.lane.b32.xlu0 %v569, 127
      %v580 = vpop.permute.xlu0 %579
      %581 = vrot.lane.b32.xlu0 %v570, 127
      %v582 = vpop.permute.xlu0 %581
      %v583 = vsel %vm521, %v580, %v582
      %v584 = vsel %vm521, %v582, %v580
      %v585 = vsel %vm526, %v583, %v578
      %v586 = vsel %vm527, %v584, %v577
      %v587 = vsel %vm532, %v578, %v583
      %v588 = vsel %vm533, %v577, %v584
      %589 = vset.pattern.permute.xlu0 3
      %590 = vperm.xlu0 %589, %v509
      %v591 = vpop.permute.xlu0 %590
      %v593 = vmul.f32 %v585, %v591
      %v594 = vmul.f32 %v586, %v591
      %595 = vset.pattern.permute.xlu0 4
      %596 = vperm.xlu0 %595, %v509
      %v597 = vpop.permute.xlu0 %596
      %v599 = vmul.f32 %v475, %v597
      %v600 = vmul.f32 %v476, %v597
      %v601 = vmul.f32 %v477, %v597
      %605 = vrot.lane.b32.xlu0 %v599, 112
      %v606 = vpop.permute.xlu0 %605
      %607 = vrot.lane.b32.xlu0 %v600, 112
      %v608 = vpop.permute.xlu0 %607
      %609 = vrot.lane.b32.xlu0 %v601, 112
      %v610 = vpop.permute.xlu0 %609
      %v611 = vsel %vm568, %v606, %v608
      %v612 = vsel %vm568, %v608, %v610
      %v615 = vadd.f32 %v593, %v611
      %v616 = vadd.f32 %v594, %v612
      %617 = vset.pattern.permute.xlu0 5
      %618 = vperm.xlu0 %617, %v509
      %v619 = vpop.permute.xlu0 %618
      %v621 = vmul.f32 %v587, %v619
      %v622 = vmul.f32 %v588, %v619
      %v623 = vadd.f32 %v615, %v621
      %v624 = vadd.f32 %v616, %v622
      %v625 = vadd.f32 %v557, %v623
      %v626 = vadd.f32 %v558, %v624
      %627 = vrot.lane.b32.xlu0 %v475, 96
      %v628 = vpop.permute.xlu0 %627
      %629 = vrot.lane.b32.xlu0 %v476, 96
      %v630 = vpop.permute.xlu0 %629
      %631 = vrot.lane.b32.xlu0 %v477, 96
      %v632 = vpop.permute.xlu0 %631
      %vm633 = vcmask 785408
      %v634 = vsel %vm633, %v628, %v630
      %v635 = vsel %vm633, %v630, %v632
      %638 = vrot.lane.b32.xlu0 %v634, 1
      %v639 = vpop.permute.xlu0 %638
      %640 = vrot.lane.b32.xlu0 %v635, 1
      %v641 = vpop.permute.xlu0 %640
      %v642 = vsel %vm514, %v639, %v641
      %v643 = vsel %vm514, %v641, %v639
      %644 = vrot.lane.b32.xlu0 %v634, 127
      %v645 = vpop.permute.xlu0 %644
      %646 = vrot.lane.b32.xlu0 %v635, 127
      %v647 = vpop.permute.xlu0 %646
      %v648 = vsel %vm521, %v645, %v647
      %v649 = vsel %vm521, %v647, %v645
      %v650 = vsel %vm526, %v648, %v643
      %v651 = vsel %vm527, %v649, %v642
      %v652 = vsel %vm532, %v643, %v648
      %v653 = vsel %vm533, %v642, %v649
      %654 = vset.pattern.permute.xlu0 6
      %655 = vperm.xlu0 %654, %v509
      %v656 = vpop.permute.xlu0 %655
      %v658 = vmul.f32 %v650, %v656
      %v659 = vmul.f32 %v651, %v656
      %660 = vset.pattern.permute.xlu0 7
      %661 = vperm.xlu0 %660, %v509
      %v662 = vpop.permute.xlu0 %661
      %v664 = vmul.f32 %v475, %v662
      %v665 = vmul.f32 %v476, %v662
      %v666 = vmul.f32 %v477, %v662
      %670 = vrot.lane.b32.xlu0 %v664, 96
      %v671 = vpop.permute.xlu0 %670
      %672 = vrot.lane.b32.xlu0 %v665, 96
      %v673 = vpop.permute.xlu0 %672
      %674 = vrot.lane.b32.xlu0 %v666, 96
      %v675 = vpop.permute.xlu0 %674
      %v676 = vsel %vm633, %v671, %v673
      %v677 = vsel %vm633, %v673, %v675
      %v680 = vadd.f32 %v658, %v676
      %v681 = vadd.f32 %v659, %v677
      %682 = vset.pattern.permute.xlu0 8
      %683 = vperm.xlu0 %682, %v509
      %v684 = vpop.permute.xlu0 %683
      %v686 = vmul.f32 %v652, %v684
      %v687 = vmul.f32 %v653, %v684
      %v688 = vadd.f32 %v680, %v686
      %v689 = vadd.f32 %v681, %v687
      %v690 = vadd.f32 %v625, %v688
      %v691 = vadd.f32 %v626, %v689
      %692 = vset.pattern.permute.xlu0 9
      %693 = vperm.xlu0 %692, %v509
      %v694 = vpop.permute.xlu0 %693
      %v696 = vadd.f32 %v690, %v694
      %v697 = vadd.f32 %v691, %v694
      %698 = vst [vmem:[%s289] sm:$0xff] %v696
      %699 = vst [vmem:[%s289 + $0x8] sm:$0xff] %v697
      %v700 = vadd.f32 %v696, %v697
      %701 = vadd.xlane.f32.xlu0 %v700
      %v702 = vpop.xlane.xlu0 %701
      %vm703 = vcmask 7168
      %704 = vst.msk [vmem:[%s297] sm:$0xff] %vm703, %v702
      %v705 = vmul.f32 %v696, %v696
      %v706 = vmul.f32 %v697, %v697
      %v707 = vadd.f32 %v705, %v706
      %708 = vadd.xlane.f32.xlu0 %v707
      %v709 = vpop.xlane.xlu0 %708
      %vm710 = vcmask 15368
      %711 = vst.msk [vmem:[%s297] sm:$0xff] %vm710, %v709
      %s712 = smul.u32 2, %s22
      %p713 = scmp.lt.s32.totalorder %s21, 1
      %s714 = scalar_select %p713, %s21, 1
      %p715 = scmp.lt.s32.totalorder %s712, 1
      %s716 = scalar_select %p715, %s712, 1
      %s717 = smul.addr %s714, 2
      %s718 = sadd.s32 %s716, %s717
      %s719 = smul.addr %s718, 8
      %s720 = scalar_lea.vmem %s4, %s719
      %p721 = scmp.lt.s32.totalorder %s21, 1
      %s722 = scalar_select %p721, %s21, 1
      %p723 = scmp.lt.s32.totalorder %s22, 0
      %s724 = scalar_select %p723, %s22, 0
      %s725 = sadd.s32 %s724, %s722
      %s726 = smul.addr %s725, 8
      %s727 = scalar_lea.vmem %s5, %s726
      // Predicated region
      $region37: #{_lambda_.5} parent=35 // pred_check
        %p728 = pneg %p145
      $region38: #{_lambda_.5} parent=35 // pred_check_branch
        %730 = sbr.rel (%p728) target = $region40
      $region39: #{_lambda_.5} parent=35 // pred_region
        %s731 = smul.u32 2, %s22
      $region40: #{_lambda_.5} parent=35 // pred_fallthru
        _
      // Predicated region
      $region41: #{_lambda_.5} parent=35 // pred_check
        %p732 = pneg %p173
      $region42: #{_lambda_.5} parent=35 // pred_check_branch
        %734 = sbr.rel (%p732) target = $region44
      $region43: #{_lambda_.5} parent=35 // pred_region
        _
      $region44: #{_lambda_.5} parent=35 // pred_fallthru
        _
    $region36: #{_lambda_.5} parent=5 // pred_fallthru
      _
    %p735 = scmp.le.s32.totalorder 2, %s12
    // Predicated region
    $region45: #{_lambda_.5} parent=5 // pred_check
      %p736 = pneg %p735
    $region46: #{_lambda_.5} parent=5 // pred_check_branch
      %738 = sbr.rel (%p736) target = $region48
    $region47: #{_lambda_.5} parent=5 // pred_region
      %s739 = ssub.s32 %s12, 2
      // Predicated region
      $region49: #{_lambda_.5} parent=47 // pred_check
        %p740 = pneg %p151
      $region50: #{_lambda_.5} parent=47 // pred_check_branch
        %742 = sbr.rel (%p740) target = $region52
      $region51: #{_lambda_.5} parent=47 // pred_region
        %s743 = smul.u32 2, %s24
        %p744 = scmp.lt.s32.totalorder %s23, 1
        %s745 = scalar_select %p744, %s23, 1
        %p746 = scmp.lt.s32.totalorder %s743, 1
        %s747 = scalar_select %p746, %s743, 1
        %s748 = smul.addr %s745, 2
        %s749 = sadd.s32 %s747, %s748
        %s750 = smul.addr %s749, 8
        %s751 = scalar_lea.vmem %s4, %s750
      $region52: #{_lambda_.5} parent=47 // pred_fallthru
        _
      // Predicated region
      $region53: #{_lambda_.5} parent=47 // pred_check
        %p752 = pneg %p179
      $region54: #{_lambda_.5} parent=47 // pred_check_branch
        %754 = sbr.rel (%p752) target = $region56
      $region55: #{_lambda_.5} parent=47 // pred_region
        %p755 = scmp.lt.s32.totalorder %s23, 1
        %s756 = scalar_select %p755, %s23, 1
        %p757 = scmp.lt.s32.totalorder %s24, 0
        %s758 = scalar_select %p757, %s24, 0
        %s759 = sadd.s32 %s758, %s756
        %s760 = smul.addr %s759, 8
        %s761 = scalar_lea.vmem %s5, %s760
      $region56: #{_lambda_.5} parent=47 // pred_fallthru
        _
    $region48: #{_lambda_.5} parent=5 // pred_fallthru
      _
  $region6: #{_lambda_.5} parent=0 // loop_footer
    %s16 = sadd.s32 1, %s12
  $region7: #{_lambda_.5} parent=0 // loop_footer_branch
    %11 = sbr.rel target = $region3
  $region8: #{_lambda_.5} parent=0 // loop_exit
    _

// kernel: _lambda_.7
$region0: #{_lambda_.7}
  #allocation0 [shape = 'u32[]', space=smem, size = 0x4, offset = 0x4, fixed_abs, tag = 'smem constant byte address 0x4 - core index']
  #allocation1 [shape = 'u32[144,128]{1,0:T(1,128)}', space=vmem, size = 0x12000, scoped, tag = 'internal scratch']
  %s0 = inlined_call_operand.vmem [shape: f32[2,4,256], index: 0, kind: input, shape index: {}]
  %s1 = inlined_call_operand.vmem [shape: f32[2,4,256], index: 1, kind: input, shape index: {}]
  %s2 = inlined_call_operand.vmem [shape: f32[2,4,2], index: 2, kind: input, shape index: {}]
  %s3 = inlined_call_operand.vmem [shape: f32[2,4,256], index: 3, kind: output, shape index: {}]
  %s4 = sld [smem:[#allocation0]]
  $region45: #{_lambda_.7} parent=0
    _
  %s6 = ssub.s32 1, %s4
  %s7 = scalar_select 0, %s6, %s4
  loop: start=0, step=1, limit=4
  $region2: #{_lambda_.7} parent=0 // loop_pre_header
    _
  $region3: #{_lambda_.7} parent=0 // loop_header
    %s9 = sphi 0, %s13
    %p10 = scmp.ge.s32.totalorder %s9, 4
    %s16 = sphi 0, %s28
    %s17 = sphi 0, %s24
    %s18 = sphi 0, %s16
    %s19 = sphi 0, %s17
    %s20 = sphi 0, %s18
    %s21 = sphi 0, %s19
    %s33 = sphi 0, %s35
    %s36 = sphi 0, %s33
    %s37 = sphi 0, %s36
    %s53 = sphi 0, %s37
    %s61 = sphi 0, %s63
    %s64 = sphi 0, %s61
    %s65 = sphi 0, %s64
    %s81 = sphi 0, %s65
    %s87 = sphi 0, %s89
    %s90 = sphi 0, %s87
    %s91 = sphi 0, %s90
    %s107 = sphi 0, %s91
    %s115 = sphi 0, %s117
    %s118 = sphi 0, %s115
    %s119 = sphi 0, %s118
    %s135 = sphi 0, %s119
  $region4: #{_lambda_.7} parent=0 // loop_header_branch
    %12 = sbr.rel (%p10) target = $region8
  $region5: #{_lambda_.7} parent=0 // loop_body
    %s14 = ssub.s32 %s9, 1
    %s15 = ssub.s32 %s9, 2
    %s22 = sadd.s32 1, %s17
    %p23 = scmp.ge.s32.totalorder %s22, 1
    %s24 = scalar_select %p23, 0, %s22
    %s25 = sadd.s32 1, %s16
    %s26 = scalar_select %p23, %s25, %s16
    %p27 = scmp.ge.s32.totalorder %s26, 2
    %s28 = scalar_select %p27, 0, %s26
    %s29 = ssub.s32 %s16, %s28
    %s30 = ssub.s32 %s17, %s24
    %s31 = sor.u32 %s29, %s30
    %p32 = scmp.eq.s32.totalorder %s31, 0
    %s34 = sadd.s32 %s33, 1
    %s35 = scalar_select %p32, %s33, %s34
    %p38 = pneg %p32
    %p39 = scmp.eq.s32.totalorder %s9, 1
    %p40 = por %p38, %p39
    %p41 = scmp.ne.s32.totalorder %s33, %s36
    %p42 = scmp.eq.s32.totalorder %s9, 0
    %p43 = por %p41, %p42
    %p44 = scmp.ne.s32.totalorder %s33, %s36
    %p45 = scmp.eq.s32.totalorder %s14, 1
    %p46 = por %p44, %p45
    %p47 = scmp.ne.s32.totalorder %s36, %s37
    %p48 = scmp.eq.s32.totalorder %s14, 0
    %p49 = por %p47, %p48
    %p50 = scmp.ne.s32.totalorder %s36, %s37
    %p51 = scmp.eq.s32.totalorder %s15, 1
    %p52 = por %p50, %p51
    %p54 = scmp.ne.s32.totalorder %s37, %s53
    %p55 = scmp.eq.s32.totalorder %s15, 0
    %p56 = por %p54, %p55
    %s57 = ssub.s32 %s16, %s28
    %s58 = ssub.s32 %s17, %s24
    %s59 = sor.u32 %s57, %s58
    %p60 = scmp.eq.s32.totalorder %s59, 0
    %s62 = sadd.s32 %s61, 1
    %s63 = scalar_select %p60, %s61, %s62
    %p66 = pneg %p60
    %p67 = scmp.eq.s32.totalorder %s9, 1
    %p68 = por %p66, %p67
    %p69 = scmp.ne.s32.totalorder %s61, %s64
    %p70 = scmp.eq.s32.totalorder %s9, 0
    %p71 = por %p69, %p70
    %p72 = scmp.ne.s32.totalorder %s61, %s64
    %p73 = scmp.eq.s32.totalorder %s14, 1
    %p74 = por %p72, %p73
    %p75 = scmp.ne.s32.totalorder %s64, %s65
    %p76 = scmp.eq.s32.totalorder %s14, 0
    %p77 = por %p75, %p76
    %p78 = scmp.ne.s32.totalorder %s64, %s65
    %p79 = scmp.eq.s32.totalorder %s15, 1
    %p80 = por %p78, %p79
    %p82 = scmp.ne.s32.totalorder %s65, %s81
    %p83 = scmp.eq.s32.totalorder %s15, 0
    %p84 = por %p82, %p83
    %s85 = ssub.s32 %s16, %s28
    %p86 = scmp.eq.s32.totalorder %s85, 0
    %s88 = sadd.s32 %s87, 1
    %s89 = scalar_select %p86, %s87, %s88
    %p92 = pneg %p86
    %p93 = scmp.eq.s32.totalorder %s9, 1
    %p94 = por %p92, %p93
    %p95 = scmp.ne.s32.totalorder %s87, %s90
    %p96 = scmp.eq.s32.totalorder %s9, 0
    %p97 = por %p95, %p96
    %p98 = scmp.ne.s32.totalorder %s87, %s90
    %p99 = scmp.eq.s32.totalorder %s14, 1
    %p100 = por %p98, %p99
    %p101 = scmp.ne.s32.totalorder %s90, %s91
    %p102 = scmp.eq.s32.totalorder %s14, 0
    %p103 = por %p101, %p102
    %p104 = scmp.ne.s32.totalorder %s90, %s91
    %p105 = scmp.eq.s32.totalorder %s15, 1
    %p106 = por %p104, %p105
    %p108 = scmp.ne.s32.totalorder %s91, %s107
    %p109 = scmp.eq.s32.totalorder %s15, 0
    %p110 = por %p108, %p109
    %s111 = ssub.s32 %s16, %s28
    %s112 = ssub.s32 %s17, %s24
    %s113 = sor.u32 %s111, %s112
    %p114 = scmp.eq.s32.totalorder %s113, 0
    %s116 = sadd.s32 %s115, 1
    %s117 = scalar_select %p114, %s115, %s116
    %p120 = pneg %p114
    %p121 = scmp.eq.s32.totalorder %s9, 1
    %p122 = por %p120, %p121
    %p123 = scmp.ne.s32.totalorder %s115, %s118
    %p124 = scmp.eq.s32.totalorder %s9, 0
    %p125 = por %p123, %p124
    %p126 = scmp.ne.s32.totalorder %s115, %s118
    %p127 = scmp.eq.s32.totalorder %s14, 1
    %p128 = por %p126, %p127
    %p129 = scmp.ne.s32.totalorder %s118, %s119
    %p130 = scmp.eq.s32.totalorder %s14, 0
    %p131 = por %p129, %p130
    %p132 = scmp.ne.s32.totalorder %s118, %s119
    %p133 = scmp.eq.s32.totalorder %s15, 1
    %p134 = por %p132, %p133
    %p136 = scmp.ne.s32.totalorder %s119, %s135
    %p137 = scmp.eq.s32.totalorder %s15, 0
    %p138 = por %p136, %p137
    %p139 = scmp.le.s32.totalorder 1, %s9
    %p140 = scmp.lt.s32.totalorder %s9, 3
    %p141 = pnand %p139, %p140
    %p142 = pneg %p141
    // Predicated region
    $region9: #{_lambda_.7} parent=5 // pred_check
      _
    $region10: #{_lambda_.7} parent=5 // pred_check_branch
      %144 = sbr.rel (%p141) target = $region12
    $region11: #{_lambda_.7} parent=5 // pred_region
      %s145 = ssub.s32 %s9, 1
    $region12: #{_lambda_.7} parent=5 // pred_fallthru
      _
    %p146 = scmp.lt.s32.totalorder %s9, 2
    // Predicated region
    $region13: #{_lambda_.7} parent=5 // pred_check
      %p147 = pneg %p146
    $region14: #{_lambda_.7} parent=5 // pred_check_branch
      %149 = sbr.rel (%p147) target = $region16
    $region15: #{_lambda_.7} parent=5 // pred_region
      // Predicated region
      $region17: #{_lambda_.7} parent=15 // pred_check
        %p150 = pneg %p43
      $region18: #{_lambda_.7} parent=15 // pred_check_branch
        %152 = sbr.rel (%p150) target = $region20
      $region19: #{_lambda_.7} parent=15 // pred_region
        %s153 = smul.u32 2, %s17
        %p154 = scmp.lt.s32.totalorder %s16, 1
        %s155 = scalar_select %p154, %s16, 1
        %p156 = scmp.lt.s32.totalorder %s153, 1
        %s157 = scalar_select %p156, %s153, 1
        %s158 = smul.addr %s155, 2
        %s159 = sadd.s32 %s157, %s158
        %s160 = smul.addr %s159, 4
        %s161 = scalar_lea.vmem %s0, %s160
        %s162 = smul.u32 2, %s17
      $region20: #{_lambda_.7} parent=15 // pred_fallthru
        _
      // Predicated region
      $region21: #{_lambda_.7} parent=15 // pred_check
        %p163 = pneg %p71
      $region22: #{_lambda_.7} parent=15 // pred_check_branch
        %165 = sbr.rel (%p163) target = $region24
      $region23: #{_lambda_.7} parent=15 // pred_region
        %s166 = smul.u32 2, %s17
        %p167 = scmp.lt.s32.totalorder %s16, 1
        %s168 = scalar_select %p167, %s16, 1
        %p169 = scmp.lt.s32.totalorder %s166, 1
        %s170 = scalar_select %p169, %s166, 1
        %s171 = smul.addr %s168, 2
        %s172 = sadd.s32 %s170, %s171
        %s173 = smul.addr %s172, 4
        %s174 = scalar_lea.vmem %s1, %s173
        %s175 = smul.u32 2, %s17
      $region24: #{_lambda_.7} parent=15 // pred_fallthru
        _
      // Predicated region
      $region25: #{_lambda_.7} parent=15 // pred_check
        %p176 = pneg %p97
      $region26: #{_lambda_.7} parent=15 // pred_check_branch
        %178 = sbr.rel (%p176) target = $region28
      $region27: #{_lambda_.7} parent=15 // pred_region
        %p179 = scmp.lt.s32.totalorder %s16, 1
        %s180 = scalar_select %p179, %s16, 1
        %s181 = smul.addr %s180, 4
        %s182 = scalar_lea.vmem %s2, %s181
      $region28: #{_lambda_.7} parent=15 // pred_fallthru
        _
    $region16: #{_lambda_.7} parent=5 // pred_fallthru
      _
    %p183 = scmp.le.s32.totalorder 1, %s9
    %p184 = scmp.lt.s32.totalorder %s9, 3
    %p185 = pnand %p183, %p184
    %p186 = pneg %p185
    // Predicated region
    $region29: #{_lambda_.7} parent=5 // pred_check
      _
    $region30: #{_lambda_.7} parent=5 // pred_check_branch
      %188 = sbr.rel (%p185) target = $region32
    $region31: #{_lambda_.7} parent=5 // pred_region
      %s189 = ssub.s32 %s9, 1
      %s190 = smul.u32 2, %s19
      %p191 = scmp.lt.s32.totalorder %s18, 1
      %s192 = scalar_select %p191, %s18, 1
      %p193 = scmp.lt.s32.totalorder %s190, 1
      %s194 = scalar_select %p193, %s190, 1
      %s195 = smul.addr %s192, 2
      %s196 = sadd.s32 %s194, %s195
      %s197 = smul.addr %s196, 4
      %s198 = scalar_lea.vmem %s0, %s197
      %p199 = pneg %p49
      %p200 = pneg %p46
      %s201 = smul.u32 2, %s19
      %p202 = scmp.lt.s32.totalorder %s18, 1
      %s203 = scalar_select %p202, %s18, 1
      %p204 = scmp.lt.s32.totalorder %s201, 1
      %s205 = scalar_select %p204, %s201, 1
      %s206 = smul.addr %s203, 2
      %s207 = sadd.s32 %s205, %s206
      %s208 = smul.addr %s207, 4
      %s209 = scalar_lea.vmem %s1, %s208
      %p210 = pneg %p77
      %p211 = pneg %p74
      %p212 = scmp.lt.s32.totalorder %s18, 1
      %s213 = scalar_select %p212, %s18, 1
      %s214 = smul.addr %s213, 4
      %s215 = scalar_lea.vmem %s2, %s214
      %p216 = pneg %p103
      %p217 = pneg %p100
      %p218 = pneg %p131
      %p219 = pneg %p128
      %s220 = smul.u32 2, %s19
      %p221 = scmp.lt.s32.totalorder %s18, 1
      %s222 = scalar_select %p221, %s18, 1
      %p223 = scmp.lt.s32.totalorder %s220, 1
      %s224 = scalar_select %p223, %s220, 1
      %s225 = smul.addr %s222, 2
      %s226 = sadd.s32 %s224, %s225
      %s227 = smul.addr %s226, 4
      %s228 = scalar_lea.vmem %s3, %s227
      %s229 = smul.u32 2, %s19
      %p230 = scmp.lt.s32.totalorder %s18, 1
      %s231 = scalar_select %p230, %s18, 1
      %p232 = scmp.lt.s32.totalorder %s229, 1
      %s233 = scalar_select %p232, %s229, 1
      %s234 = smul.addr %s231, 2
      %s235 = sadd.s32 %s233, %s234
      %s236 = smul.addr %s235, 4
      %s237 = scalar_lea.vmem %s0, %s236
      %s238 = smul.u32 2, %s19
      %s239 = smul.u32 2, %s19
      %p240 = scmp.lt.s32.totalorder %s18, 1
      %s241 = scalar_select %p240, %s18, 1
      %p242 = scmp.lt.s32.totalorder %s239, 1
      %s243 = scalar_select %p242, %s239, 1
      %s244 = smul.addr %s241, 2
      %s245 = sadd.s32 %s243, %s244
      %s246 = smul.addr %s245, 4
      %s247 = scalar_lea.vmem %s1, %s246
      %s248 = smul.u32 2, %s19
      %p249 = scmp.lt.s32.totalorder %s18, 1
      %s250 = scalar_select %p249, %s18, 1
      %s251 = smul.addr %s250, 4
      %s252 = scalar_lea.vmem %s2, %s251
      %s253 = smul.u32 2, %s19
      %p254 = scmp.lt.s32.totalorder %s18, 1
      %s255 = scalar_select %p254, %s18, 1
      %p256 = scmp.lt.s32.totalorder %s253, 1
      %s257 = scalar_select %p256, %s253, 1
      %s258 = smul.addr %s255, 2
      %s259 = sadd.s32 %s257, %s258
      %s260 = smul.addr %s259, 4
      %s261 = scalar_lea.vmem %s3, %s260
      %s262 = smul.u32 2, %s19
      %v263 = vld [vmem:[%s252] sm:$0xf]
      %v264 = vld [vmem:[%s237] sm:$0xff]
      %266 = vset.pattern.permute.xlu0 0
      %267 = vperm.xlu0 %266, %v263
      %v268 = vpop.permute.xlu0 %267
      %v270 = vunpack.c.l.s4 839922192
      %v271 = vunpack.c.0.s8 %v270
      %v272 = vlaneseq
      %v273 = vshrl.u32 %v272, 7
      %v274 = vsub.s32 %v271, %v273
      %v275 = vrot.slane %v268, %v274
      %v277 = vmul.f32 %v264, %v275
      %278 = vset.pattern.permute.xlu0 1
      %279 = vperm.xlu0 %278, %v263
      %v280 = vpop.permute.xlu0 %279
      %v282 = vunpack.c.l.s4 839922192
      %v283 = vunpack.c.0.s8 %v282
      %v284 = vlaneseq
      %v285 = vshrl.u32 %v284, 7
      %v286 = vsub.s32 %v283, %v285
      %v287 = vrot.slane %v280, %v286
      %v289 = vadd.f32 %v277, %v287
      %v290 = vld [vmem:[%s247] sm:$0xff]
      %v291 = vadd.f32 %v289, %v290
      %292 = vst [vmem:[%s261] sm:$0xff] %v291
      %s293 = smul.u32 2, %s19
      %p294 = scmp.lt.s32.totalorder %s18, 1
      %s295 = scalar_select %p294, %s18, 1
      %p296 = scmp.lt.s32.totalorder %s293, 1
      %s297 = scalar_select %p296, %s293, 1
      %s298 = smul.addr %s295, 2
      %s299 = sadd.s32 %s297, %s298
      %s300 = smul.addr %s299, 4
      %s301 = scalar_lea.vmem %s3, %s300
      // Predicated region
      $region33: #{_lambda_.7} parent=31 // pred_check
        %p302 = pneg %p128
      $region34: #{_lambda_.7} parent=31 // pred_check_branch
        %304 = sbr.rel (%p302) target = $region36
      $region35: #{_lambda_.7} parent=31 // pred_region
        %s305 = smul.u32 2, %s19
      $region36: #{_lambda_.7} parent=31 // pred_fallthru
        _
    $region32: #{_lambda_.7} parent=5 // pred_fallthru
      _
    %p306 = scmp.le.s32.totalorder 2, %s9
    // Predicated region
    $region37: #{_lambda_.7} parent=5 // pred_check
      %p307 = pneg %p306
    $region38: #{_lambda_.7} parent=5 // pred_check_branch
      %309 = sbr.rel (%p307) target = $region40
    $region39: #{_lambda_.7} parent=5 // pred_region
      %s310 = ssub.s32 %s9, 2
      // Predicated region
      $region41: #{_lambda_.7} parent=39 // pred_check
        %p311 = pneg %p134
      $region42: #{_lambda_.7} parent=39 // pred_check_branch
        %313 = sbr.rel (%p311) target = $region44
      $region43: #{_lambda_.7} parent=39 // pred_region
        %s314 = smul.u32 2, %s21
        %p315 = scmp.lt.s32.totalorder %s20, 1
        %s316 = scalar_select %p315, %s20, 1
        %p317 = scmp.lt.s32.totalorder %s314, 1
        %s318 = scalar_select %p317, %s314, 1
        %s319 = smul.addr %s316, 2
        %s320 = sadd.s32 %s318, %s319
        %s321 = smul.addr %s320, 4
        %s322 = scalar_lea.vmem %s3, %s321
      $region44: #{_lambda_.7} parent=39 // pred_fallthru
        _
    $region40: #{_lambda_.7} parent=5 // pred_fallthru
      _
  $region6: #{_lambda_.7} parent=0 // loop_footer
    %s13 = sadd.s32 1, %s9
  $region7: #{_lambda_.7} parent=0 // loop_footer_branch
    %8 = sbr.rel target = $region3
  $region8: #{_lambda_.7} parent=0 // loop_exit
    _

</llo_original>
